<compile_context>
chip_gen: v6e
topology: v6e:2x2x1
jax: 0.10.0
libtpu: 0.0.40
codegen_flags: <defaults>
</compile_context>

<pallas_src>
import jax
import jax.numpy as jnp
from jax.experimental import pallas as pl
from jax.experimental.pallas import tpu as pltpu

# ---- KAN grid constants (shared, uniform knots -> baked in as Python floats) ----
GRID_SIZE = 5
SPLINE_ORDER = 3
GRID_RANGE = (-1.0, 1.0)
H = (GRID_RANGE[1] - GRID_RANGE[0]) / GRID_SIZE
KNOTS = tuple(float(i) * H + GRID_RANGE[0]
              for i in range(-SPLINE_ORDER, GRID_SIZE + SPLINE_ORDER + 1))  # 12 knots
N_COEFF = GRID_SIZE + SPLINE_ORDER  # 8 B-spline basis functions per input feature

LANE = 128
SUBLANE = 8
MAX_BATCH_BLOCK = 256  # matches v7x MXU M-dim; only kicks in for large batches


# ----------------------------------- kernel -----------------------------------------
def _kan_features(x):
    """[SiLU(x) | B0(x) | ... | B7(x)] with shape (rows, In*(N_COEFF+1)), f32."""
    # SiLU: exp on EUP, reciprocal instead of a literal divide.
    silu = x * pl.reciprocal(1.0 + jnp.exp(-x), approx=False)

    # Order-0 bases (half-open intervals, matches efficient-kan / the reference).
    n0 = len(KNOTS) - 1  # 11
    bases = [((x >= KNOTS[i]) & (x < KNOTS[i + 1])).astype(jnp.float32)
             for i in range(n0)]

    # (x - knot_i) computed once, reused across all recursion levels.
    d = [x - KNOTS[i] for i in range(n0)]

    # Cox-de-Boor with uniform knots: denominators are k*H (constant), and
    # (t[i+k+1]-x)/(k*H) == 1 - (x - t[i+1])/(k*H)  ->  shared factors u[i].
    for k in range(1, SPLINE_ORDER + 1):
        inv = 1.0 / (k * H)                      # Python-float reciprocal (constant folded)
        n = len(bases)
        u = [d[i] * inv for i in range(n)]
        bases = [u[i] * bases[i] + (1.0 - u[i + 1]) * bases[i + 1]
                 for i in range(n - 1)]          # ends with N_COEFF = 8 bases

    return jnp.concatenate([silu] + bases, axis=-1)


def _classifier_kernel(x_ref, w1_ref, w2_ref, o_ref):
    """Fused: layer1 KANLinear -> layer2 KANLinear, intermediate stays in VMEM/vregs."""
    x = x_ref[...].astype(jnp.float32)                                   # (TB, In)
    f1 = _kan_features(x)                                                # (TB, In*9)
    h = jnp.dot(f1, w1_ref[...], preferred_element_type=jnp.float32)     # (TB, Hidden)
    f2 = _kan_features(h)                                                # (TB, Hidden*9)
    o_ref[...] = jnp.dot(f2, w2_ref[...], preferred_element_type=jnp.float32)


# --------------------------- one-time parameter preparation --------------------------
def _fuse_kan_weights(base_w, spline_w_scaled, out_pad=None):
    """Build the ((N_COEFF+1)*In, Out[_pad]) weight slab matching the kernel's
    [silu | b0 | ... | b7] (coeff-major) feature layout."""
    out_f, in_f = base_w.shape
    w_base = jnp.asarray(base_w, jnp.float32).T                               # (In, Out)
    w_spl = jnp.transpose(jnp.asarray(spline_w_scaled, jnp.float32), (2, 1, 0))
    w_spl = w_spl.reshape(N_COEFF * in_f, out_f)                              # (8*In, Out)
    w = jnp.concatenate([w_base, w_spl], axis=0)                              # (9*In, Out)
    if out_pad is not None and out_pad > out_f:
        w = jnp.pad(w, ((0, 0), (0, out_pad - out_f)))                        # lane-dense output
    return w


def prepare_classifier_params(params):
    """Hoisted out of the forward path: layout plumbing done once."""
    out_dim = params["l2_base_w"].shape[0]
    out_pad = max(LANE, pl.cdiv(out_dim, LANE) * LANE)
    return {
        "w1": _fuse_kan_weights(params["l1_base_w"], params["l1_spline_w_scaled"]),
        "w2": _fuse_kan_weights(params["l2_base_w"], params["l2_spline_w_scaled"],
                                out_pad=out_pad),
        "out_dim": out_dim,
    }


# ----------------------------------- forward ----------------------------------------
def classifier_forward(x, prepared):
    """Classifier.forward (n_layers=2, eval mode). x: (B, in_shape) -> (B, out_shape)."""
    w1, w2 = prepared["w1"], prepared["w2"]
    out_dim = prepared["out_dim"]
    B, in_f = x.shape
    k1, hidden = w1.shape
    k2, out_pad = w2.shape
    assert k1 == (N_COEFF + 1) * in_f and k2 == (N_COEFF + 1) * hidden

    x = jnp.asarray(x, jnp.float32)
    # Batch tiling: single block for small B, 256-row blocks (parallel grid) for large B.
    if B <= MAX_BATCH_BLOCK:
        tb = max(SUBLANE, pl.cdiv(B, SUBLANE) * SUBLANE)
    else:
        tb = MAX_BATCH_BLOCK
    b_pad = pl.cdiv(B, tb) * tb
    if b_pad != B:
        x = jnp.pad(x, ((0, b_pad - B), (0, 0)))

    # TODO(synk): when in_f/hidden grow, set pipeline_mode=pl.Buffered(1) on the constant
    #             weight specs (or K-tile) to avoid double-buffering the slabs on v7x VMEM.
    out = pl.pallas_call(
        _classifier_kernel,
        out_shape=jax.ShapeDtypeStruct((b_pad, out_pad), jnp.float32),
        grid=(b_pad // tb,),
        in_specs=[
            pl.BlockSpec((tb, in_f), lambda i: (i, 0)),
            pl.BlockSpec((k1, hidden), lambda i: (0, 0)),
            pl.BlockSpec((k2, out_pad), lambda i: (0, 0)),
        ],
        out_specs=pl.BlockSpec((tb, out_pad), lambda i: (i, 0)),
        compiler_params=pltpu.CompilerParams(dimension_semantics=("parallel",)),
    )(x, w1, w2)
    return out[:B, :out_dim]


# ------------------------------- pure-JAX reference ----------------------------------
def _kan_ref(x, base_w, spline_w_scaled):
    silu = x * jax.nn.sigmoid(x)
    base_out = silu @ base_w.T
    knots = jnp.asarray(KNOTS, jnp.float32)
    xk = x[:, :, None]
    bases = ((xk >= knots[:-1]) & (xk < knots[1:])).astype(jnp.float32)
    for k in range(1, SPLINE_ORDER + 1):
        bases = ((xk - knots[: -(k + 1)]) / (knots[k:-1] - knots[: -(k + 1)]) * bases[:, :, :-1]
                 + (knots[k + 1:] - xk) / (knots[k + 1:] - knots[1:-k]) * bases[:, :, 1:])
    spline_out = bases.reshape(x.shape[0], -1) @ spline_w_scaled.reshape(
        spline_w_scaled.shape[0], -1).T
    return base_out + spline_out


def _classifier_ref(x, params):
    h = _kan_ref(x, params["l1_base_w"], params["l1_spline_w_scaled"])
    return _kan_ref(h, params["l2_base_w"], params["l2_spline_w_scaled"])


# -------------------------------------- main -----------------------------------------
def _init_params(key, in_shape, out_shape):
    """Classifier(n_layers=2): layer1 = KANLinear(in, in), layer2 = KANLinear(in, out)."""
    ks = jax.random.split(key, 6)

    def kaiming_uniform(k, shape):
        bound = (6.0 / shape[1]) ** 0.5
        return jax.random.uniform(k, shape, jnp.float32, -bound, bound)

    l1_base_w = kaiming_uniform(ks[0], (in_shape, in_shape))
    l1_spline_w = 0.1 * jax.random.normal(ks[1], (in_shape, in_shape, N_COEFF), jnp.float32)
    l1_scaler = kaiming_uniform(ks[2], (in_shape, in_shape))
    l2_base_w = kaiming_uniform(ks[3], (out_shape, in_shape))
    l2_spline_w = 0.1 * jax.random.normal(ks[4], (out_shape, in_shape, N_COEFF), jnp.float32)
    l2_scaler = kaiming_uniform(ks[5], (out_shape, in_shape))

    return {
        "l1_base_w": l1_base_w,
        "l1_spline_w_scaled": l1_spline_w * l1_scaler[:, :, None],
        "l2_base_w": l2_base_w,
        "l2_spline_w_scaled": l2_spline_w * l2_scaler[:, :, None],
    }


if __name__ == "__main__":
    B, IN_SHAPE, OUT_SHAPE = 8, 64, 9   # module defaults: in_shape=64, out_shape=9

    key = jax.random.PRNGKey(0)
    k_x, k_p = jax.random.split(key)
    x = jax.random.normal(k_x, (B, IN_SHAPE), jnp.float32) * 0.5  # mostly inside the KAN grid
    params = _init_params(k_p, IN_SHAPE, OUT_SHAPE)

    prepared = prepare_classifier_params(params)   # one-time weight layout prep
    out = classifier_forward(x, prepared)
    out = jax.block_until_ready(out)

    ref = _classifier_ref(x, params)
    assert out.shape == (B, OUT_SHAPE)
    assert jnp.allclose(out, ref, atol=1e-4, rtol=1e-4), "Pallas kernel mismatch vs JAX reference"

    print("KERNEL_OK")
</pallas_src>

<mosaic_0001>
module attributes {stable_mosaic.version = 11 : i64} {
  func.func @_classifier_kernel(%arg0: i32, %arg1: memref<8x64xf32, #tpu.memory_space<vmem>>, %arg2: memref<576x64xf32, #tpu.memory_space<vmem>>, %arg3: memref<576x128xf32, #tpu.memory_space<vmem>>, %arg4: memref<8x128xf32, #tpu.memory_space<vmem>>) attributes {dimension_semantics = [#tpu.dimension_semantics<parallel>], iteration_bounds = array<i64: 1>, scalar_prefetch = 0 : i64, scratch_operands = 0 : i64, tpu.core_type = #tpu.core_type<tc>, window_params = [{transform_indices = @transform_0, window_bounds = array<i64: 8, 64>}, {pipeline_mode = #tpu.pipeline_mode<synchronous>, transform_indices = @transform_1, window_bounds = array<i64: 576, 64>}, {pipeline_mode = #tpu.pipeline_mode<synchronous>, transform_indices = @transform_2, window_bounds = array<i64: 576, 128>}, {transform_indices = @transform_3, window_bounds = array<i64: 8, 128>}]} {
    %c0 = arith.constant 0 : index
    %c0_0 = arith.constant 0 : index
    %0 = vector.load %arg1[%c0, %c0_0] : memref<8x64xf32, #tpu.memory_space<vmem>>, vector<8x64xf32>
    %cst = arith.constant 0.000000e+00 : f32
    %1 = vector.broadcast %cst : f32 to vector<8x64xf32>
    %2 = arith.subf %1, %0 : vector<8x64xf32>
    %3 = math.exp %2 : vector<8x64xf32>
    %cst_1 = arith.constant 1.000000e+00 : f32
    %4 = vector.broadcast %cst_1 : f32 to vector<8x64xf32>
    %5 = arith.addf %4, %3 : vector<8x64xf32>
    %6 = tpu.reciprocal %5 : vector<8x64xf32> -> vector<8x64xf32>
    %7 = arith.mulf %0, %6 : vector<8x64xf32>
    %cst_2 = arith.constant -2.200000e+00 : f32
    %8 = vector.broadcast %cst_2 : f32 to vector<8x64xf32>
    %9 = arith.cmpf oge, %0, %8 : vector<8x64xf32>
    %cst_3 = arith.constant -1.800000e+00 : f32
    %10 = vector.broadcast %cst_3 : f32 to vector<8x64xf32>
    %11 = arith.cmpf olt, %0, %10 : vector<8x64xf32>
    %12 = arith.andi %9, %11 : vector<8x64xi1>
    %13 = arith.extui %12 : vector<8x64xi1> to vector<8x64xi32>
    %14 = arith.sitofp %13 : vector<8x64xi32> to vector<8x64xf32>
    %cst_4 = arith.constant -1.800000e+00 : f32
    %15 = vector.broadcast %cst_4 : f32 to vector<8x64xf32>
    %16 = arith.cmpf oge, %0, %15 : vector<8x64xf32>
    %cst_5 = arith.constant -1.400000e+00 : f32
    %17 = vector.broadcast %cst_5 : f32 to vector<8x64xf32>
    %18 = arith.cmpf olt, %0, %17 : vector<8x64xf32>
    %19 = arith.andi %16, %18 : vector<8x64xi1>
    %20 = arith.extui %19 : vector<8x64xi1> to vector<8x64xi32>
    %21 = arith.sitofp %20 : vector<8x64xi32> to vector<8x64xf32>
    %cst_6 = arith.constant -1.400000e+00 : f32
    %22 = vector.broadcast %cst_6 : f32 to vector<8x64xf32>
    %23 = arith.cmpf oge, %0, %22 : vector<8x64xf32>
    %cst_7 = arith.constant -1.000000e+00 : f32
    %24 = vector.broadcast %cst_7 : f32 to vector<8x64xf32>
    %25 = arith.cmpf olt, %0, %24 : vector<8x64xf32>
    %26 = arith.andi %23, %25 : vector<8x64xi1>
    %27 = arith.extui %26 : vector<8x64xi1> to vector<8x64xi32>
    %28 = arith.sitofp %27 : vector<8x64xi32> to vector<8x64xf32>
    %cst_8 = arith.constant -1.000000e+00 : f32
    %29 = vector.broadcast %cst_8 : f32 to vector<8x64xf32>
    %30 = arith.cmpf oge, %0, %29 : vector<8x64xf32>
    %cst_9 = arith.constant -6.000000e-01 : f32
    %31 = vector.broadcast %cst_9 : f32 to vector<8x64xf32>
    %32 = arith.cmpf olt, %0, %31 : vector<8x64xf32>
    %33 = arith.andi %30, %32 : vector<8x64xi1>
    %34 = arith.extui %33 : vector<8x64xi1> to vector<8x64xi32>
    %35 = arith.sitofp %34 : vector<8x64xi32> to vector<8x64xf32>
    %cst_10 = arith.constant -6.000000e-01 : f32
    %36 = vector.broadcast %cst_10 : f32 to vector<8x64xf32>
    %37 = arith.cmpf oge, %0, %36 : vector<8x64xf32>
    %cst_11 = arith.constant -2.000000e-01 : f32
    %38 = vector.broadcast %cst_11 : f32 to vector<8x64xf32>
    %39 = arith.cmpf olt, %0, %38 : vector<8x64xf32>
    %40 = arith.andi %37, %39 : vector<8x64xi1>
    %41 = arith.extui %40 : vector<8x64xi1> to vector<8x64xi32>
    %42 = arith.sitofp %41 : vector<8x64xi32> to vector<8x64xf32>
    %cst_12 = arith.constant -2.000000e-01 : f32
    %43 = vector.broadcast %cst_12 : f32 to vector<8x64xf32>
    %44 = arith.cmpf oge, %0, %43 : vector<8x64xf32>
    %cst_13 = arith.constant 2.000000e-01 : f32
    %45 = vector.broadcast %cst_13 : f32 to vector<8x64xf32>
    %46 = arith.cmpf olt, %0, %45 : vector<8x64xf32>
    %47 = arith.andi %44, %46 : vector<8x64xi1>
    %48 = arith.extui %47 : vector<8x64xi1> to vector<8x64xi32>
    %49 = arith.sitofp %48 : vector<8x64xi32> to vector<8x64xf32>
    %cst_14 = arith.constant 2.000000e-01 : f32
    %50 = vector.broadcast %cst_14 : f32 to vector<8x64xf32>
    %51 = arith.cmpf oge, %0, %50 : vector<8x64xf32>
    %cst_15 = arith.constant 6.000000e-01 : f32
    %52 = vector.broadcast %cst_15 : f32 to vector<8x64xf32>
    %53 = arith.cmpf olt, %0, %52 : vector<8x64xf32>
    %54 = arith.andi %51, %53 : vector<8x64xi1>
    %55 = arith.extui %54 : vector<8x64xi1> to vector<8x64xi32>
    %56 = arith.sitofp %55 : vector<8x64xi32> to vector<8x64xf32>
    %cst_16 = arith.constant 6.000000e-01 : f32
    %57 = vector.broadcast %cst_16 : f32 to vector<8x64xf32>
    %58 = arith.cmpf oge, %0, %57 : vector<8x64xf32>
    %cst_17 = arith.constant 1.000000e+00 : f32
    %59 = vector.broadcast %cst_17 : f32 to vector<8x64xf32>
    %60 = arith.cmpf olt, %0, %59 : vector<8x64xf32>
    %61 = arith.andi %58, %60 : vector<8x64xi1>
    %62 = arith.extui %61 : vector<8x64xi1> to vector<8x64xi32>
    %63 = arith.sitofp %62 : vector<8x64xi32> to vector<8x64xf32>
    %cst_18 = arith.constant 1.000000e+00 : f32
    %64 = vector.broadcast %cst_18 : f32 to vector<8x64xf32>
    %65 = arith.cmpf oge, %0, %64 : vector<8x64xf32>
    %cst_19 = arith.constant 1.400000e+00 : f32
    %66 = vector.broadcast %cst_19 : f32 to vector<8x64xf32>
    %67 = arith.cmpf olt, %0, %66 : vector<8x64xf32>
    %68 = arith.andi %65, %67 : vector<8x64xi1>
    %69 = arith.extui %68 : vector<8x64xi1> to vector<8x64xi32>
    %70 = arith.sitofp %69 : vector<8x64xi32> to vector<8x64xf32>
    %cst_20 = arith.constant 1.400000e+00 : f32
    %71 = vector.broadcast %cst_20 : f32 to vector<8x64xf32>
    %72 = arith.cmpf oge, %0, %71 : vector<8x64xf32>
    %cst_21 = arith.constant 1.800000e+00 : f32
    %73 = vector.broadcast %cst_21 : f32 to vector<8x64xf32>
    %74 = arith.cmpf olt, %0, %73 : vector<8x64xf32>
    %75 = arith.andi %72, %74 : vector<8x64xi1>
    %76 = arith.extui %75 : vector<8x64xi1> to vector<8x64xi32>
    %77 = arith.sitofp %76 : vector<8x64xi32> to vector<8x64xf32>
    %cst_22 = arith.constant 1.800000e+00 : f32
    %78 = vector.broadcast %cst_22 : f32 to vector<8x64xf32>
    %79 = arith.cmpf oge, %0, %78 : vector<8x64xf32>
    %cst_23 = arith.constant 2.200000e+00 : f32
    %80 = vector.broadcast %cst_23 : f32 to vector<8x64xf32>
    %81 = arith.cmpf olt, %0, %80 : vector<8x64xf32>
    %82 = arith.andi %79, %81 : vector<8x64xi1>
    %83 = arith.extui %82 : vector<8x64xi1> to vector<8x64xi32>
    %84 = arith.sitofp %83 : vector<8x64xi32> to vector<8x64xf32>
    %cst_24 = arith.constant -2.200000e+00 : f32
    %85 = vector.broadcast %cst_24 : f32 to vector<8x64xf32>
    %86 = arith.subf %0, %85 : vector<8x64xf32>
    %cst_25 = arith.constant -1.800000e+00 : f32
    %87 = vector.broadcast %cst_25 : f32 to vector<8x64xf32>
    %88 = arith.subf %0, %87 : vector<8x64xf32>
    %cst_26 = arith.constant -1.400000e+00 : f32
    %89 = vector.broadcast %cst_26 : f32 to vector<8x64xf32>
    %90 = arith.subf %0, %89 : vector<8x64xf32>
    %cst_27 = arith.constant -1.000000e+00 : f32
    %91 = vector.broadcast %cst_27 : f32 to vector<8x64xf32>
    %92 = arith.subf %0, %91 : vector<8x64xf32>
    %cst_28 = arith.constant -6.000000e-01 : f32
    %93 = vector.broadcast %cst_28 : f32 to vector<8x64xf32>
    %94 = arith.subf %0, %93 : vector<8x64xf32>
    %cst_29 = arith.constant -2.000000e-01 : f32
    %95 = vector.broadcast %cst_29 : f32 to vector<8x64xf32>
    %96 = arith.subf %0, %95 : vector<8x64xf32>
    %cst_30 = arith.constant 2.000000e-01 : f32
    %97 = vector.broadcast %cst_30 : f32 to vector<8x64xf32>
    %98 = arith.subf %0, %97 : vector<8x64xf32>
    %cst_31 = arith.constant 6.000000e-01 : f32
    %99 = vector.broadcast %cst_31 : f32 to vector<8x64xf32>
    %100 = arith.subf %0, %99 : vector<8x64xf32>
    %cst_32 = arith.constant 1.000000e+00 : f32
    %101 = vector.broadcast %cst_32 : f32 to vector<8x64xf32>
    %102 = arith.subf %0, %101 : vector<8x64xf32>
    %cst_33 = arith.constant 1.400000e+00 : f32
    %103 = vector.broadcast %cst_33 : f32 to vector<8x64xf32>
    %104 = arith.subf %0, %103 : vector<8x64xf32>
    %cst_34 = arith.constant 1.800000e+00 : f32
    %105 = vector.broadcast %cst_34 : f32 to vector<8x64xf32>
    %106 = arith.subf %0, %105 : vector<8x64xf32>
    %cst_35 = arith.constant 2.500000e+00 : f32
    %107 = vector.broadcast %cst_35 : f32 to vector<8x64xf32>
    %108 = arith.mulf %86, %107 : vector<8x64xf32>
    %cst_36 = arith.constant 2.500000e+00 : f32
    %109 = vector.broadcast %cst_36 : f32 to vector<8x64xf32>
    %110 = arith.mulf %88, %109 : vector<8x64xf32>
    %cst_37 = arith.constant 2.500000e+00 : f32
    %111 = vector.broadcast %cst_37 : f32 to vector<8x64xf32>
    %112 = arith.mulf %90, %111 : vector<8x64xf32>
    %cst_38 = arith.constant 2.500000e+00 : f32
    %113 = vector.broadcast %cst_38 : f32 to vector<8x64xf32>
    %114 = arith.mulf %92, %113 : vector<8x64xf32>
    %cst_39 = arith.constant 2.500000e+00 : f32
    %115 = vector.broadcast %cst_39 : f32 to vector<8x64xf32>
    %116 = arith.mulf %94, %115 : vector<8x64xf32>
    %cst_40 = arith.constant 2.500000e+00 : f32
    %117 = vector.broadcast %cst_40 : f32 to vector<8x64xf32>
    %118 = arith.mulf %96, %117 : vector<8x64xf32>
    %cst_41 = arith.constant 2.500000e+00 : f32
    %119 = vector.broadcast %cst_41 : f32 to vector<8x64xf32>
    %120 = arith.mulf %98, %119 : vector<8x64xf32>
    %cst_42 = arith.constant 2.500000e+00 : f32
    %121 = vector.broadcast %cst_42 : f32 to vector<8x64xf32>
    %122 = arith.mulf %100, %121 : vector<8x64xf32>
    %cst_43 = arith.constant 2.500000e+00 : f32
    %123 = vector.broadcast %cst_43 : f32 to vector<8x64xf32>
    %124 = arith.mulf %102, %123 : vector<8x64xf32>
    %cst_44 = arith.constant 2.500000e+00 : f32
    %125 = vector.broadcast %cst_44 : f32 to vector<8x64xf32>
    %126 = arith.mulf %104, %125 : vector<8x64xf32>
    %cst_45 = arith.constant 2.500000e+00 : f32
    %127 = vector.broadcast %cst_45 : f32 to vector<8x64xf32>
    %128 = arith.mulf %106, %127 : vector<8x64xf32>
    %129 = arith.mulf %108, %14 : vector<8x64xf32>
    %cst_46 = arith.constant 1.000000e+00 : f32
    %130 = vector.broadcast %cst_46 : f32 to vector<8x64xf32>
    %131 = arith.subf %130, %110 : vector<8x64xf32>
    %132 = arith.mulf %131, %21 : vector<8x64xf32>
    %133 = arith.addf %129, %132 : vector<8x64xf32>
    %134 = arith.mulf %110, %21 : vector<8x64xf32>
    %cst_47 = arith.constant 1.000000e+00 : f32
    %135 = vector.broadcast %cst_47 : f32 to vector<8x64xf32>
    %136 = arith.subf %135, %112 : vector<8x64xf32>
    %137 = arith.mulf %136, %28 : vector<8x64xf32>
    %138 = arith.addf %134, %137 : vector<8x64xf32>
    %139 = arith.mulf %112, %28 : vector<8x64xf32>
    %cst_48 = arith.constant 1.000000e+00 : f32
    %140 = vector.broadcast %cst_48 : f32 to vector<8x64xf32>
    %141 = arith.subf %140, %114 : vector<8x64xf32>
    %142 = arith.mulf %141, %35 : vector<8x64xf32>
    %143 = arith.addf %139, %142 : vector<8x64xf32>
    %144 = arith.mulf %114, %35 : vector<8x64xf32>
    %cst_49 = arith.constant 1.000000e+00 : f32
    %145 = vector.broadcast %cst_49 : f32 to vector<8x64xf32>
    %146 = arith.subf %145, %116 : vector<8x64xf32>
    %147 = arith.mulf %146, %42 : vector<8x64xf32>
    %148 = arith.addf %144, %147 : vector<8x64xf32>
    %149 = arith.mulf %116, %42 : vector<8x64xf32>
    %cst_50 = arith.constant 1.000000e+00 : f32
    %150 = vector.broadcast %cst_50 : f32 to vector<8x64xf32>
    %151 = arith.subf %150, %118 : vector<8x64xf32>
    %152 = arith.mulf %151, %49 : vector<8x64xf32>
    %153 = arith.addf %149, %152 : vector<8x64xf32>
    %154 = arith.mulf %118, %49 : vector<8x64xf32>
    %cst_51 = arith.constant 1.000000e+00 : f32
    %155 = vector.broadcast %cst_51 : f32 to vector<8x64xf32>
    %156 = arith.subf %155, %120 : vector<8x64xf32>
    %157 = arith.mulf %156, %56 : vector<8x64xf32>
    %158 = arith.addf %154, %157 : vector<8x64xf32>
    %159 = arith.mulf %120, %56 : vector<8x64xf32>
    %cst_52 = arith.constant 1.000000e+00 : f32
    %160 = vector.broadcast %cst_52 : f32 to vector<8x64xf32>
    %161 = arith.subf %160, %122 : vector<8x64xf32>
    %162 = arith.mulf %161, %63 : vector<8x64xf32>
    %163 = arith.addf %159, %162 : vector<8x64xf32>
    %164 = arith.mulf %122, %63 : vector<8x64xf32>
    %cst_53 = arith.constant 1.000000e+00 : f32
    %165 = vector.broadcast %cst_53 : f32 to vector<8x64xf32>
    %166 = arith.subf %165, %124 : vector<8x64xf32>
    %167 = arith.mulf %166, %70 : vector<8x64xf32>
    %168 = arith.addf %164, %167 : vector<8x64xf32>
    %169 = arith.mulf %124, %70 : vector<8x64xf32>
    %cst_54 = arith.constant 1.000000e+00 : f32
    %170 = vector.broadcast %cst_54 : f32 to vector<8x64xf32>
    %171 = arith.subf %170, %126 : vector<8x64xf32>
    %172 = arith.mulf %171, %77 : vector<8x64xf32>
    %173 = arith.addf %169, %172 : vector<8x64xf32>
    %174 = arith.mulf %126, %77 : vector<8x64xf32>
    %cst_55 = arith.constant 1.000000e+00 : f32
    %175 = vector.broadcast %cst_55 : f32 to vector<8x64xf32>
    %176 = arith.subf %175, %128 : vector<8x64xf32>
    %177 = arith.mulf %176, %84 : vector<8x64xf32>
    %178 = arith.addf %174, %177 : vector<8x64xf32>
    %cst_56 = arith.constant 1.250000e+00 : f32
    %179 = vector.broadcast %cst_56 : f32 to vector<8x64xf32>
    %180 = arith.mulf %86, %179 : vector<8x64xf32>
    %cst_57 = arith.constant 1.250000e+00 : f32
    %181 = vector.broadcast %cst_57 : f32 to vector<8x64xf32>
    %182 = arith.mulf %88, %181 : vector<8x64xf32>
    %cst_58 = arith.constant 1.250000e+00 : f32
    %183 = vector.broadcast %cst_58 : f32 to vector<8x64xf32>
    %184 = arith.mulf %90, %183 : vector<8x64xf32>
    %cst_59 = arith.constant 1.250000e+00 : f32
    %185 = vector.broadcast %cst_59 : f32 to vector<8x64xf32>
    %186 = arith.mulf %92, %185 : vector<8x64xf32>
    %cst_60 = arith.constant 1.250000e+00 : f32
    %187 = vector.broadcast %cst_60 : f32 to vector<8x64xf32>
    %188 = arith.mulf %94, %187 : vector<8x64xf32>
    %cst_61 = arith.constant 1.250000e+00 : f32
    %189 = vector.broadcast %cst_61 : f32 to vector<8x64xf32>
    %190 = arith.mulf %96, %189 : vector<8x64xf32>
    %cst_62 = arith.constant 1.250000e+00 : f32
    %191 = vector.broadcast %cst_62 : f32 to vector<8x64xf32>
    %192 = arith.mulf %98, %191 : vector<8x64xf32>
    %cst_63 = arith.constant 1.250000e+00 : f32
    %193 = vector.broadcast %cst_63 : f32 to vector<8x64xf32>
    %194 = arith.mulf %100, %193 : vector<8x64xf32>
    %cst_64 = arith.constant 1.250000e+00 : f32
    %195 = vector.broadcast %cst_64 : f32 to vector<8x64xf32>
    %196 = arith.mulf %102, %195 : vector<8x64xf32>
    %cst_65 = arith.constant 1.250000e+00 : f32
    %197 = vector.broadcast %cst_65 : f32 to vector<8x64xf32>
    %198 = arith.mulf %104, %197 : vector<8x64xf32>
    %199 = arith.mulf %180, %133 : vector<8x64xf32>
    %cst_66 = arith.constant 1.000000e+00 : f32
    %200 = vector.broadcast %cst_66 : f32 to vector<8x64xf32>
    %201 = arith.subf %200, %182 : vector<8x64xf32>
    %202 = arith.mulf %201, %138 : vector<8x64xf32>
    %203 = arith.addf %199, %202 : vector<8x64xf32>
    %204 = arith.mulf %182, %138 : vector<8x64xf32>
    %cst_67 = arith.constant 1.000000e+00 : f32
    %205 = vector.broadcast %cst_67 : f32 to vector<8x64xf32>
    %206 = arith.subf %205, %184 : vector<8x64xf32>
    %207 = arith.mulf %206, %143 : vector<8x64xf32>
    %208 = arith.addf %204, %207 : vector<8x64xf32>
    %209 = arith.mulf %184, %143 : vector<8x64xf32>
    %cst_68 = arith.constant 1.000000e+00 : f32
    %210 = vector.broadcast %cst_68 : f32 to vector<8x64xf32>
    %211 = arith.subf %210, %186 : vector<8x64xf32>
    %212 = arith.mulf %211, %148 : vector<8x64xf32>
    %213 = arith.addf %209, %212 : vector<8x64xf32>
    %214 = arith.mulf %186, %148 : vector<8x64xf32>
    %cst_69 = arith.constant 1.000000e+00 : f32
    %215 = vector.broadcast %cst_69 : f32 to vector<8x64xf32>
    %216 = arith.subf %215, %188 : vector<8x64xf32>
    %217 = arith.mulf %216, %153 : vector<8x64xf32>
    %218 = arith.addf %214, %217 : vector<8x64xf32>
    %219 = arith.mulf %188, %153 : vector<8x64xf32>
    %cst_70 = arith.constant 1.000000e+00 : f32
    %220 = vector.broadcast %cst_70 : f32 to vector<8x64xf32>
    %221 = arith.subf %220, %190 : vector<8x64xf32>
    %222 = arith.mulf %221, %158 : vector<8x64xf32>
    %223 = arith.addf %219, %222 : vector<8x64xf32>
    %224 = arith.mulf %190, %158 : vector<8x64xf32>
    %cst_71 = arith.constant 1.000000e+00 : f32
    %225 = vector.broadcast %cst_71 : f32 to vector<8x64xf32>
    %226 = arith.subf %225, %192 : vector<8x64xf32>
    %227 = arith.mulf %226, %163 : vector<8x64xf32>
    %228 = arith.addf %224, %227 : vector<8x64xf32>
    %229 = arith.mulf %192, %163 : vector<8x64xf32>
    %cst_72 = arith.constant 1.000000e+00 : f32
    %230 = vector.broadcast %cst_72 : f32 to vector<8x64xf32>
    %231 = arith.subf %230, %194 : vector<8x64xf32>
    %232 = arith.mulf %231, %168 : vector<8x64xf32>
    %233 = arith.addf %229, %232 : vector<8x64xf32>
    %234 = arith.mulf %194, %168 : vector<8x64xf32>
    %cst_73 = arith.constant 1.000000e+00 : f32
    %235 = vector.broadcast %cst_73 : f32 to vector<8x64xf32>
    %236 = arith.subf %235, %196 : vector<8x64xf32>
    %237 = arith.mulf %236, %173 : vector<8x64xf32>
    %238 = arith.addf %234, %237 : vector<8x64xf32>
    %239 = arith.mulf %196, %173 : vector<8x64xf32>
    %cst_74 = arith.constant 1.000000e+00 : f32
    %240 = vector.broadcast %cst_74 : f32 to vector<8x64xf32>
    %241 = arith.subf %240, %198 : vector<8x64xf32>
    %242 = arith.mulf %241, %178 : vector<8x64xf32>
    %243 = arith.addf %239, %242 : vector<8x64xf32>
    %cst_75 = arith.constant 0.833333313 : f32
    %244 = vector.broadcast %cst_75 : f32 to vector<8x64xf32>
    %245 = arith.mulf %86, %244 : vector<8x64xf32>
    %cst_76 = arith.constant 0.833333313 : f32
    %246 = vector.broadcast %cst_76 : f32 to vector<8x64xf32>
    %247 = arith.mulf %88, %246 : vector<8x64xf32>
    %cst_77 = arith.constant 0.833333313 : f32
    %248 = vector.broadcast %cst_77 : f32 to vector<8x64xf32>
    %249 = arith.mulf %90, %248 : vector<8x64xf32>
    %cst_78 = arith.constant 0.833333313 : f32
    %250 = vector.broadcast %cst_78 : f32 to vector<8x64xf32>
    %251 = arith.mulf %92, %250 : vector<8x64xf32>
    %cst_79 = arith.constant 0.833333313 : f32
    %252 = vector.broadcast %cst_79 : f32 to vector<8x64xf32>
    %253 = arith.mulf %94, %252 : vector<8x64xf32>
    %cst_80 = arith.constant 0.833333313 : f32
    %254 = vector.broadcast %cst_80 : f32 to vector<8x64xf32>
    %255 = arith.mulf %96, %254 : vector<8x64xf32>
    %cst_81 = arith.constant 0.833333313 : f32
    %256 = vector.broadcast %cst_81 : f32 to vector<8x64xf32>
    %257 = arith.mulf %98, %256 : vector<8x64xf32>
    %cst_82 = arith.constant 0.833333313 : f32
    %258 = vector.broadcast %cst_82 : f32 to vector<8x64xf32>
    %259 = arith.mulf %100, %258 : vector<8x64xf32>
    %cst_83 = arith.constant 0.833333313 : f32
    %260 = vector.broadcast %cst_83 : f32 to vector<8x64xf32>
    %261 = arith.mulf %102, %260 : vector<8x64xf32>
    %262 = arith.mulf %245, %203 : vector<8x64xf32>
    %cst_84 = arith.constant 1.000000e+00 : f32
    %263 = vector.broadcast %cst_84 : f32 to vector<8x64xf32>
    %264 = arith.subf %263, %247 : vector<8x64xf32>
    %265 = arith.mulf %264, %208 : vector<8x64xf32>
    %266 = arith.addf %262, %265 : vector<8x64xf32>
    %267 = arith.mulf %247, %208 : vector<8x64xf32>
    %cst_85 = arith.constant 1.000000e+00 : f32
    %268 = vector.broadcast %cst_85 : f32 to vector<8x64xf32>
    %269 = arith.subf %268, %249 : vector<8x64xf32>
    %270 = arith.mulf %269, %213 : vector<8x64xf32>
    %271 = arith.addf %267, %270 : vector<8x64xf32>
    %272 = arith.mulf %249, %213 : vector<8x64xf32>
    %cst_86 = arith.constant 1.000000e+00 : f32
    %273 = vector.broadcast %cst_86 : f32 to vector<8x64xf32>
    %274 = arith.subf %273, %251 : vector<8x64xf32>
    %275 = arith.mulf %274, %218 : vector<8x64xf32>
    %276 = arith.addf %272, %275 : vector<8x64xf32>
    %277 = arith.mulf %251, %218 : vector<8x64xf32>
    %cst_87 = arith.constant 1.000000e+00 : f32
    %278 = vector.broadcast %cst_87 : f32 to vector<8x64xf32>
    %279 = arith.subf %278, %253 : vector<8x64xf32>
    %280 = arith.mulf %279, %223 : vector<8x64xf32>
    %281 = arith.addf %277, %280 : vector<8x64xf32>
    %282 = arith.mulf %253, %223 : vector<8x64xf32>
    %cst_88 = arith.constant 1.000000e+00 : f32
    %283 = vector.broadcast %cst_88 : f32 to vector<8x64xf32>
    %284 = arith.subf %283, %255 : vector<8x64xf32>
    %285 = arith.mulf %284, %228 : vector<8x64xf32>
    %286 = arith.addf %282, %285 : vector<8x64xf32>
    %287 = arith.mulf %255, %228 : vector<8x64xf32>
    %cst_89 = arith.constant 1.000000e+00 : f32
    %288 = vector.broadcast %cst_89 : f32 to vector<8x64xf32>
    %289 = arith.subf %288, %257 : vector<8x64xf32>
    %290 = arith.mulf %289, %233 : vector<8x64xf32>
    %291 = arith.addf %287, %290 : vector<8x64xf32>
    %292 = arith.mulf %257, %233 : vector<8x64xf32>
    %cst_90 = arith.constant 1.000000e+00 : f32
    %293 = vector.broadcast %cst_90 : f32 to vector<8x64xf32>
    %294 = arith.subf %293, %259 : vector<8x64xf32>
    %295 = arith.mulf %294, %238 : vector<8x64xf32>
    %296 = arith.addf %292, %295 : vector<8x64xf32>
    %297 = arith.mulf %259, %238 : vector<8x64xf32>
    %cst_91 = arith.constant 1.000000e+00 : f32
    %298 = vector.broadcast %cst_91 : f32 to vector<8x64xf32>
    %299 = arith.subf %298, %261 : vector<8x64xf32>
    %300 = arith.mulf %299, %243 : vector<8x64xf32>
    %301 = arith.addf %297, %300 : vector<8x64xf32>
    %302 = tpu.concatenate %7, %266, %271, %276, %281, %286, %291, %296, %301 in 1 : vector<8x64xf32>, vector<8x64xf32>, vector<8x64xf32>, vector<8x64xf32>, vector<8x64xf32>, vector<8x64xf32>, vector<8x64xf32>, vector<8x64xf32>, vector<8x64xf32> -> vector<8x576xf32>
    %c0_92 = arith.constant 0 : index
    %c0_93 = arith.constant 0 : index
    %303 = vector.load %arg2[%c0_92, %c0_93] : memref<576x64xf32, #tpu.memory_space<vmem>>, vector<576x64xf32>
    %cst_94 = arith.constant dense<0.000000e+00> : vector<8x64xf32>
    %304 = tpu.matmul %302, %303, %cst_94 {dimension_numbers = #tpu.dot_dimension_numbers<[1], [0], [0], [1], [0, 0, 1, 1], [], []>} : vector<8x576xf32>, vector<576x64xf32>, vector<8x64xf32> -> vector<8x64xf32>
    %cst_95 = arith.constant 0.000000e+00 : f32
    %305 = vector.broadcast %cst_95 : f32 to vector<8x64xf32>
    %306 = arith.subf %305, %304 : vector<8x64xf32>
    %307 = math.exp %306 : vector<8x64xf32>
    %cst_96 = arith.constant 1.000000e+00 : f32
    %308 = vector.broadcast %cst_96 : f32 to vector<8x64xf32>
    %309 = arith.addf %308, %307 : vector<8x64xf32>
    %310 = tpu.reciprocal %309 : vector<8x64xf32> -> vector<8x64xf32>
    %311 = arith.mulf %304, %310 : vector<8x64xf32>
    %cst_97 = arith.constant -2.200000e+00 : f32
    %312 = vector.broadcast %cst_97 : f32 to vector<8x64xf32>
    %313 = arith.cmpf oge, %304, %312 : vector<8x64xf32>
    %cst_98 = arith.constant -1.800000e+00 : f32
    %314 = vector.broadcast %cst_98 : f32 to vector<8x64xf32>
    %315 = arith.cmpf olt, %304, %314 : vector<8x64xf32>
    %316 = arith.andi %313, %315 : vector<8x64xi1>
    %317 = arith.extui %316 : vector<8x64xi1> to vector<8x64xi32>
    %318 = arith.sitofp %317 : vector<8x64xi32> to vector<8x64xf32>
    %cst_99 = arith.constant -1.800000e+00 : f32
    %319 = vector.broadcast %cst_99 : f32 to vector<8x64xf32>
    %320 = arith.cmpf oge, %304, %319 : vector<8x64xf32>
    %cst_100 = arith.constant -1.400000e+00 : f32
    %321 = vector.broadcast %cst_100 : f32 to vector<8x64xf32>
    %322 = arith.cmpf olt, %304, %321 : vector<8x64xf32>
    %323 = arith.andi %320, %322 : vector<8x64xi1>
    %324 = arith.extui %323 : vector<8x64xi1> to vector<8x64xi32>
    %325 = arith.sitofp %324 : vector<8x64xi32> to vector<8x64xf32>
    %cst_101 = arith.constant -1.400000e+00 : f32
    %326 = vector.broadcast %cst_101 : f32 to vector<8x64xf32>
    %327 = arith.cmpf oge, %304, %326 : vector<8x64xf32>
    %cst_102 = arith.constant -1.000000e+00 : f32
    %328 = vector.broadcast %cst_102 : f32 to vector<8x64xf32>
    %329 = arith.cmpf olt, %304, %328 : vector<8x64xf32>
    %330 = arith.andi %327, %329 : vector<8x64xi1>
    %331 = arith.extui %330 : vector<8x64xi1> to vector<8x64xi32>
    %332 = arith.sitofp %331 : vector<8x64xi32> to vector<8x64xf32>
    %cst_103 = arith.constant -1.000000e+00 : f32
    %333 = vector.broadcast %cst_103 : f32 to vector<8x64xf32>
    %334 = arith.cmpf oge, %304, %333 : vector<8x64xf32>
    %cst_104 = arith.constant -6.000000e-01 : f32
    %335 = vector.broadcast %cst_104 : f32 to vector<8x64xf32>
    %336 = arith.cmpf olt, %304, %335 : vector<8x64xf32>
    %337 = arith.andi %334, %336 : vector<8x64xi1>
    %338 = arith.extui %337 : vector<8x64xi1> to vector<8x64xi32>
    %339 = arith.sitofp %338 : vector<8x64xi32> to vector<8x64xf32>
    %cst_105 = arith.constant -6.000000e-01 : f32
    %340 = vector.broadcast %cst_105 : f32 to vector<8x64xf32>
    %341 = arith.cmpf oge, %304, %340 : vector<8x64xf32>
    %cst_106 = arith.constant -2.000000e-01 : f32
    %342 = vector.broadcast %cst_106 : f32 to vector<8x64xf32>
    %343 = arith.cmpf olt, %304, %342 : vector<8x64xf32>
    %344 = arith.andi %341, %343 : vector<8x64xi1>
    %345 = arith.extui %344 : vector<8x64xi1> to vector<8x64xi32>
    %346 = arith.sitofp %345 : vector<8x64xi32> to vector<8x64xf32>
    %cst_107 = arith.constant -2.000000e-01 : f32
    %347 = vector.broadcast %cst_107 : f32 to vector<8x64xf32>
    %348 = arith.cmpf oge, %304, %347 : vector<8x64xf32>
    %cst_108 = arith.constant 2.000000e-01 : f32
    %349 = vector.broadcast %cst_108 : f32 to vector<8x64xf32>
    %350 = arith.cmpf olt, %304, %349 : vector<8x64xf32>
    %351 = arith.andi %348, %350 : vector<8x64xi1>
    %352 = arith.extui %351 : vector<8x64xi1> to vector<8x64xi32>
    %353 = arith.sitofp %352 : vector<8x64xi32> to vector<8x64xf32>
    %cst_109 = arith.constant 2.000000e-01 : f32
    %354 = vector.broadcast %cst_109 : f32 to vector<8x64xf32>
    %355 = arith.cmpf oge, %304, %354 : vector<8x64xf32>
    %cst_110 = arith.constant 6.000000e-01 : f32
    %356 = vector.broadcast %cst_110 : f32 to vector<8x64xf32>
    %357 = arith.cmpf olt, %304, %356 : vector<8x64xf32>
    %358 = arith.andi %355, %357 : vector<8x64xi1>
    %359 = arith.extui %358 : vector<8x64xi1> to vector<8x64xi32>
    %360 = arith.sitofp %359 : vector<8x64xi32> to vector<8x64xf32>
    %cst_111 = arith.constant 6.000000e-01 : f32
    %361 = vector.broadcast %cst_111 : f32 to vector<8x64xf32>
    %362 = arith.cmpf oge, %304, %361 : vector<8x64xf32>
    %cst_112 = arith.constant 1.000000e+00 : f32
    %363 = vector.broadcast %cst_112 : f32 to vector<8x64xf32>
    %364 = arith.cmpf olt, %304, %363 : vector<8x64xf32>
    %365 = arith.andi %362, %364 : vector<8x64xi1>
    %366 = arith.extui %365 : vector<8x64xi1> to vector<8x64xi32>
    %367 = arith.sitofp %366 : vector<8x64xi32> to vector<8x64xf32>
    %cst_113 = arith.constant 1.000000e+00 : f32
    %368 = vector.broadcast %cst_113 : f32 to vector<8x64xf32>
    %369 = arith.cmpf oge, %304, %368 : vector<8x64xf32>
    %cst_114 = arith.constant 1.400000e+00 : f32
    %370 = vector.broadcast %cst_114 : f32 to vector<8x64xf32>
    %371 = arith.cmpf olt, %304, %370 : vector<8x64xf32>
    %372 = arith.andi %369, %371 : vector<8x64xi1>
    %373 = arith.extui %372 : vector<8x64xi1> to vector<8x64xi32>
    %374 = arith.sitofp %373 : vector<8x64xi32> to vector<8x64xf32>
    %cst_115 = arith.constant 1.400000e+00 : f32
    %375 = vector.broadcast %cst_115 : f32 to vector<8x64xf32>
    %376 = arith.cmpf oge, %304, %375 : vector<8x64xf32>
    %cst_116 = arith.constant 1.800000e+00 : f32
    %377 = vector.broadcast %cst_116 : f32 to vector<8x64xf32>
    %378 = arith.cmpf olt, %304, %377 : vector<8x64xf32>
    %379 = arith.andi %376, %378 : vector<8x64xi1>
    %380 = arith.extui %379 : vector<8x64xi1> to vector<8x64xi32>
    %381 = arith.sitofp %380 : vector<8x64xi32> to vector<8x64xf32>
    %cst_117 = arith.constant 1.800000e+00 : f32
    %382 = vector.broadcast %cst_117 : f32 to vector<8x64xf32>
    %383 = arith.cmpf oge, %304, %382 : vector<8x64xf32>
    %cst_118 = arith.constant 2.200000e+00 : f32
    %384 = vector.broadcast %cst_118 : f32 to vector<8x64xf32>
    %385 = arith.cmpf olt, %304, %384 : vector<8x64xf32>
    %386 = arith.andi %383, %385 : vector<8x64xi1>
    %387 = arith.extui %386 : vector<8x64xi1> to vector<8x64xi32>
    %388 = arith.sitofp %387 : vector<8x64xi32> to vector<8x64xf32>
    %cst_119 = arith.constant -2.200000e+00 : f32
    %389 = vector.broadcast %cst_119 : f32 to vector<8x64xf32>
    %390 = arith.subf %304, %389 : vector<8x64xf32>
    %cst_120 = arith.constant -1.800000e+00 : f32
    %391 = vector.broadcast %cst_120 : f32 to vector<8x64xf32>
    %392 = arith.subf %304, %391 : vector<8x64xf32>
    %cst_121 = arith.constant -1.400000e+00 : f32
    %393 = vector.broadcast %cst_121 : f32 to vector<8x64xf32>
    %394 = arith.subf %304, %393 : vector<8x64xf32>
    %cst_122 = arith.constant -1.000000e+00 : f32
    %395 = vector.broadcast %cst_122 : f32 to vector<8x64xf32>
    %396 = arith.subf %304, %395 : vector<8x64xf32>
    %cst_123 = arith.constant -6.000000e-01 : f32
    %397 = vector.broadcast %cst_123 : f32 to vector<8x64xf32>
    %398 = arith.subf %304, %397 : vector<8x64xf32>
    %cst_124 = arith.constant -2.000000e-01 : f32
    %399 = vector.broadcast %cst_124 : f32 to vector<8x64xf32>
    %400 = arith.subf %304, %399 : vector<8x64xf32>
    %cst_125 = arith.constant 2.000000e-01 : f32
    %401 = vector.broadcast %cst_125 : f32 to vector<8x64xf32>
    %402 = arith.subf %304, %401 : vector<8x64xf32>
    %cst_126 = arith.constant 6.000000e-01 : f32
    %403 = vector.broadcast %cst_126 : f32 to vector<8x64xf32>
    %404 = arith.subf %304, %403 : vector<8x64xf32>
    %cst_127 = arith.constant 1.000000e+00 : f32
    %405 = vector.broadcast %cst_127 : f32 to vector<8x64xf32>
    %406 = arith.subf %304, %405 : vector<8x64xf32>
    %cst_128 = arith.constant 1.400000e+00 : f32
    %407 = vector.broadcast %cst_128 : f32 to vector<8x64xf32>
    %408 = arith.subf %304, %407 : vector<8x64xf32>
    %cst_129 = arith.constant 1.800000e+00 : f32
    %409 = vector.broadcast %cst_129 : f32 to vector<8x64xf32>
    %410 = arith.subf %304, %409 : vector<8x64xf32>
    %cst_130 = arith.constant 2.500000e+00 : f32
    %411 = vector.broadcast %cst_130 : f32 to vector<8x64xf32>
    %412 = arith.mulf %390, %411 : vector<8x64xf32>
    %cst_131 = arith.constant 2.500000e+00 : f32
    %413 = vector.broadcast %cst_131 : f32 to vector<8x64xf32>
    %414 = arith.mulf %392, %413 : vector<8x64xf32>
    %cst_132 = arith.constant 2.500000e+00 : f32
    %415 = vector.broadcast %cst_132 : f32 to vector<8x64xf32>
    %416 = arith.mulf %394, %415 : vector<8x64xf32>
    %cst_133 = arith.constant 2.500000e+00 : f32
    %417 = vector.broadcast %cst_133 : f32 to vector<8x64xf32>
    %418 = arith.mulf %396, %417 : vector<8x64xf32>
    %cst_134 = arith.constant 2.500000e+00 : f32
    %419 = vector.broadcast %cst_134 : f32 to vector<8x64xf32>
    %420 = arith.mulf %398, %419 : vector<8x64xf32>
    %cst_135 = arith.constant 2.500000e+00 : f32
    %421 = vector.broadcast %cst_135 : f32 to vector<8x64xf32>
    %422 = arith.mulf %400, %421 : vector<8x64xf32>
    %cst_136 = arith.constant 2.500000e+00 : f32
    %423 = vector.broadcast %cst_136 : f32 to vector<8x64xf32>
    %424 = arith.mulf %402, %423 : vector<8x64xf32>
    %cst_137 = arith.constant 2.500000e+00 : f32
    %425 = vector.broadcast %cst_137 : f32 to vector<8x64xf32>
    %426 = arith.mulf %404, %425 : vector<8x64xf32>
    %cst_138 = arith.constant 2.500000e+00 : f32
    %427 = vector.broadcast %cst_138 : f32 to vector<8x64xf32>
    %428 = arith.mulf %406, %427 : vector<8x64xf32>
    %cst_139 = arith.constant 2.500000e+00 : f32
    %429 = vector.broadcast %cst_139 : f32 to vector<8x64xf32>
    %430 = arith.mulf %408, %429 : vector<8x64xf32>
    %cst_140 = arith.constant 2.500000e+00 : f32
    %431 = vector.broadcast %cst_140 : f32 to vector<8x64xf32>
    %432 = arith.mulf %410, %431 : vector<8x64xf32>
    %433 = arith.mulf %412, %318 : vector<8x64xf32>
    %cst_141 = arith.constant 1.000000e+00 : f32
    %434 = vector.broadcast %cst_141 : f32 to vector<8x64xf32>
    %435 = arith.subf %434, %414 : vector<8x64xf32>
    %436 = arith.mulf %435, %325 : vector<8x64xf32>
    %437 = arith.addf %433, %436 : vector<8x64xf32>
    %438 = arith.mulf %414, %325 : vector<8x64xf32>
    %cst_142 = arith.constant 1.000000e+00 : f32
    %439 = vector.broadcast %cst_142 : f32 to vector<8x64xf32>
    %440 = arith.subf %439, %416 : vector<8x64xf32>
    %441 = arith.mulf %440, %332 : vector<8x64xf32>
    %442 = arith.addf %438, %441 : vector<8x64xf32>
    %443 = arith.mulf %416, %332 : vector<8x64xf32>
    %cst_143 = arith.constant 1.000000e+00 : f32
    %444 = vector.broadcast %cst_143 : f32 to vector<8x64xf32>
    %445 = arith.subf %444, %418 : vector<8x64xf32>
    %446 = arith.mulf %445, %339 : vector<8x64xf32>
    %447 = arith.addf %443, %446 : vector<8x64xf32>
    %448 = arith.mulf %418, %339 : vector<8x64xf32>
    %cst_144 = arith.constant 1.000000e+00 : f32
    %449 = vector.broadcast %cst_144 : f32 to vector<8x64xf32>
    %450 = arith.subf %449, %420 : vector<8x64xf32>
    %451 = arith.mulf %450, %346 : vector<8x64xf32>
    %452 = arith.addf %448, %451 : vector<8x64xf32>
    %453 = arith.mulf %420, %346 : vector<8x64xf32>
    %cst_145 = arith.constant 1.000000e+00 : f32
    %454 = vector.broadcast %cst_145 : f32 to vector<8x64xf32>
    %455 = arith.subf %454, %422 : vector<8x64xf32>
    %456 = arith.mulf %455, %353 : vector<8x64xf32>
    %457 = arith.addf %453, %456 : vector<8x64xf32>
    %458 = arith.mulf %422, %353 : vector<8x64xf32>
    %cst_146 = arith.constant 1.000000e+00 : f32
    %459 = vector.broadcast %cst_146 : f32 to vector<8x64xf32>
    %460 = arith.subf %459, %424 : vector<8x64xf32>
    %461 = arith.mulf %460, %360 : vector<8x64xf32>
    %462 = arith.addf %458, %461 : vector<8x64xf32>
    %463 = arith.mulf %424, %360 : vector<8x64xf32>
    %cst_147 = arith.constant 1.000000e+00 : f32
    %464 = vector.broadcast %cst_147 : f32 to vector<8x64xf32>
    %465 = arith.subf %464, %426 : vector<8x64xf32>
    %466 = arith.mulf %465, %367 : vector<8x64xf32>
    %467 = arith.addf %463, %466 : vector<8x64xf32>
    %468 = arith.mulf %426, %367 : vector<8x64xf32>
    %cst_148 = arith.constant 1.000000e+00 : f32
    %469 = vector.broadcast %cst_148 : f32 to vector<8x64xf32>
    %470 = arith.subf %469, %428 : vector<8x64xf32>
    %471 = arith.mulf %470, %374 : vector<8x64xf32>
    %472 = arith.addf %468, %471 : vector<8x64xf32>
    %473 = arith.mulf %428, %374 : vector<8x64xf32>
    %cst_149 = arith.constant 1.000000e+00 : f32
    %474 = vector.broadcast %cst_149 : f32 to vector<8x64xf32>
    %475 = arith.subf %474, %430 : vector<8x64xf32>
    %476 = arith.mulf %475, %381 : vector<8x64xf32>
    %477 = arith.addf %473, %476 : vector<8x64xf32>
    %478 = arith.mulf %430, %381 : vector<8x64xf32>
    %cst_150 = arith.constant 1.000000e+00 : f32
    %479 = vector.broadcast %cst_150 : f32 to vector<8x64xf32>
    %480 = arith.subf %479, %432 : vector<8x64xf32>
    %481 = arith.mulf %480, %388 : vector<8x64xf32>
    %482 = arith.addf %478, %481 : vector<8x64xf32>
    %cst_151 = arith.constant 1.250000e+00 : f32
    %483 = vector.broadcast %cst_151 : f32 to vector<8x64xf32>
    %484 = arith.mulf %390, %483 : vector<8x64xf32>
    %cst_152 = arith.constant 1.250000e+00 : f32
    %485 = vector.broadcast %cst_152 : f32 to vector<8x64xf32>
    %486 = arith.mulf %392, %485 : vector<8x64xf32>
    %cst_153 = arith.constant 1.250000e+00 : f32
    %487 = vector.broadcast %cst_153 : f32 to vector<8x64xf32>
    %488 = arith.mulf %394, %487 : vector<8x64xf32>
    %cst_154 = arith.constant 1.250000e+00 : f32
    %489 = vector.broadcast %cst_154 : f32 to vector<8x64xf32>
    %490 = arith.mulf %396, %489 : vector<8x64xf32>
    %cst_155 = arith.constant 1.250000e+00 : f32
    %491 = vector.broadcast %cst_155 : f32 to vector<8x64xf32>
    %492 = arith.mulf %398, %491 : vector<8x64xf32>
    %cst_156 = arith.constant 1.250000e+00 : f32
    %493 = vector.broadcast %cst_156 : f32 to vector<8x64xf32>
    %494 = arith.mulf %400, %493 : vector<8x64xf32>
    %cst_157 = arith.constant 1.250000e+00 : f32
    %495 = vector.broadcast %cst_157 : f32 to vector<8x64xf32>
    %496 = arith.mulf %402, %495 : vector<8x64xf32>
    %cst_158 = arith.constant 1.250000e+00 : f32
    %497 = vector.broadcast %cst_158 : f32 to vector<8x64xf32>
    %498 = arith.mulf %404, %497 : vector<8x64xf32>
    %cst_159 = arith.constant 1.250000e+00 : f32
    %499 = vector.broadcast %cst_159 : f32 to vector<8x64xf32>
    %500 = arith.mulf %406, %499 : vector<8x64xf32>
    %cst_160 = arith.constant 1.250000e+00 : f32
    %501 = vector.broadcast %cst_160 : f32 to vector<8x64xf32>
    %502 = arith.mulf %408, %501 : vector<8x64xf32>
    %503 = arith.mulf %484, %437 : vector<8x64xf32>
    %cst_161 = arith.constant 1.000000e+00 : f32
    %504 = vector.broadcast %cst_161 : f32 to vector<8x64xf32>
    %505 = arith.subf %504, %486 : vector<8x64xf32>
    %506 = arith.mulf %505, %442 : vector<8x64xf32>
    %507 = arith.addf %503, %506 : vector<8x64xf32>
    %508 = arith.mulf %486, %442 : vector<8x64xf32>
    %cst_162 = arith.constant 1.000000e+00 : f32
    %509 = vector.broadcast %cst_162 : f32 to vector<8x64xf32>
    %510 = arith.subf %509, %488 : vector<8x64xf32>
    %511 = arith.mulf %510, %447 : vector<8x64xf32>
    %512 = arith.addf %508, %511 : vector<8x64xf32>
    %513 = arith.mulf %488, %447 : vector<8x64xf32>
    %cst_163 = arith.constant 1.000000e+00 : f32
    %514 = vector.broadcast %cst_163 : f32 to vector<8x64xf32>
    %515 = arith.subf %514, %490 : vector<8x64xf32>
    %516 = arith.mulf %515, %452 : vector<8x64xf32>
    %517 = arith.addf %513, %516 : vector<8x64xf32>
    %518 = arith.mulf %490, %452 : vector<8x64xf32>
    %cst_164 = arith.constant 1.000000e+00 : f32
    %519 = vector.broadcast %cst_164 : f32 to vector<8x64xf32>
    %520 = arith.subf %519, %492 : vector<8x64xf32>
    %521 = arith.mulf %520, %457 : vector<8x64xf32>
    %522 = arith.addf %518, %521 : vector<8x64xf32>
    %523 = arith.mulf %492, %457 : vector<8x64xf32>
    %cst_165 = arith.constant 1.000000e+00 : f32
    %524 = vector.broadcast %cst_165 : f32 to vector<8x64xf32>
    %525 = arith.subf %524, %494 : vector<8x64xf32>
    %526 = arith.mulf %525, %462 : vector<8x64xf32>
    %527 = arith.addf %523, %526 : vector<8x64xf32>
    %528 = arith.mulf %494, %462 : vector<8x64xf32>
    %cst_166 = arith.constant 1.000000e+00 : f32
    %529 = vector.broadcast %cst_166 : f32 to vector<8x64xf32>
    %530 = arith.subf %529, %496 : vector<8x64xf32>
    %531 = arith.mulf %530, %467 : vector<8x64xf32>
    %532 = arith.addf %528, %531 : vector<8x64xf32>
    %533 = arith.mulf %496, %467 : vector<8x64xf32>
    %cst_167 = arith.constant 1.000000e+00 : f32
    %534 = vector.broadcast %cst_167 : f32 to vector<8x64xf32>
    %535 = arith.subf %534, %498 : vector<8x64xf32>
    %536 = arith.mulf %535, %472 : vector<8x64xf32>
    %537 = arith.addf %533, %536 : vector<8x64xf32>
    %538 = arith.mulf %498, %472 : vector<8x64xf32>
    %cst_168 = arith.constant 1.000000e+00 : f32
    %539 = vector.broadcast %cst_168 : f32 to vector<8x64xf32>
    %540 = arith.subf %539, %500 : vector<8x64xf32>
    %541 = arith.mulf %540, %477 : vector<8x64xf32>
    %542 = arith.addf %538, %541 : vector<8x64xf32>
    %543 = arith.mulf %500, %477 : vector<8x64xf32>
    %cst_169 = arith.constant 1.000000e+00 : f32
    %544 = vector.broadcast %cst_169 : f32 to vector<8x64xf32>
    %545 = arith.subf %544, %502 : vector<8x64xf32>
    %546 = arith.mulf %545, %482 : vector<8x64xf32>
    %547 = arith.addf %543, %546 : vector<8x64xf32>
    %cst_170 = arith.constant 0.833333313 : f32
    %548 = vector.broadcast %cst_170 : f32 to vector<8x64xf32>
    %549 = arith.mulf %390, %548 : vector<8x64xf32>
    %cst_171 = arith.constant 0.833333313 : f32
    %550 = vector.broadcast %cst_171 : f32 to vector<8x64xf32>
    %551 = arith.mulf %392, %550 : vector<8x64xf32>
    %cst_172 = arith.constant 0.833333313 : f32
    %552 = vector.broadcast %cst_172 : f32 to vector<8x64xf32>
    %553 = arith.mulf %394, %552 : vector<8x64xf32>
    %cst_173 = arith.constant 0.833333313 : f32
    %554 = vector.broadcast %cst_173 : f32 to vector<8x64xf32>
    %555 = arith.mulf %396, %554 : vector<8x64xf32>
    %cst_174 = arith.constant 0.833333313 : f32
    %556 = vector.broadcast %cst_174 : f32 to vector<8x64xf32>
    %557 = arith.mulf %398, %556 : vector<8x64xf32>
    %cst_175 = arith.constant 0.833333313 : f32
    %558 = vector.broadcast %cst_175 : f32 to vector<8x64xf32>
    %559 = arith.mulf %400, %558 : vector<8x64xf32>
    %cst_176 = arith.constant 0.833333313 : f32
    %560 = vector.broadcast %cst_176 : f32 to vector<8x64xf32>
    %561 = arith.mulf %402, %560 : vector<8x64xf32>
    %cst_177 = arith.constant 0.833333313 : f32
    %562 = vector.broadcast %cst_177 : f32 to vector<8x64xf32>
    %563 = arith.mulf %404, %562 : vector<8x64xf32>
    %cst_178 = arith.constant 0.833333313 : f32
    %564 = vector.broadcast %cst_178 : f32 to vector<8x64xf32>
    %565 = arith.mulf %406, %564 : vector<8x64xf32>
    %566 = arith.mulf %549, %507 : vector<8x64xf32>
    %cst_179 = arith.constant 1.000000e+00 : f32
    %567 = vector.broadcast %cst_179 : f32 to vector<8x64xf32>
    %568 = arith.subf %567, %551 : vector<8x64xf32>
    %569 = arith.mulf %568, %512 : vector<8x64xf32>
    %570 = arith.addf %566, %569 : vector<8x64xf32>
    %571 = arith.mulf %551, %512 : vector<8x64xf32>
    %cst_180 = arith.constant 1.000000e+00 : f32
    %572 = vector.broadcast %cst_180 : f32 to vector<8x64xf32>
    %573 = arith.subf %572, %553 : vector<8x64xf32>
    %574 = arith.mulf %573, %517 : vector<8x64xf32>
    %575 = arith.addf %571, %574 : vector<8x64xf32>
    %576 = arith.mulf %553, %517 : vector<8x64xf32>
    %cst_181 = arith.constant 1.000000e+00 : f32
    %577 = vector.broadcast %cst_181 : f32 to vector<8x64xf32>
    %578 = arith.subf %577, %555 : vector<8x64xf32>
    %579 = arith.mulf %578, %522 : vector<8x64xf32>
    %580 = arith.addf %576, %579 : vector<8x64xf32>
    %581 = arith.mulf %555, %522 : vector<8x64xf32>
    %cst_182 = arith.constant 1.000000e+00 : f32
    %582 = vector.broadcast %cst_182 : f32 to vector<8x64xf32>
    %583 = arith.subf %582, %557 : vector<8x64xf32>
    %584 = arith.mulf %583, %527 : vector<8x64xf32>
    %585 = arith.addf %581, %584 : vector<8x64xf32>
    %586 = arith.mulf %557, %527 : vector<8x64xf32>
    %cst_183 = arith.constant 1.000000e+00 : f32
    %587 = vector.broadcast %cst_183 : f32 to vector<8x64xf32>
    %588 = arith.subf %587, %559 : vector<8x64xf32>
    %589 = arith.mulf %588, %532 : vector<8x64xf32>
    %590 = arith.addf %586, %589 : vector<8x64xf32>
    %591 = arith.mulf %559, %532 : vector<8x64xf32>
    %cst_184 = arith.constant 1.000000e+00 : f32
    %592 = vector.broadcast %cst_184 : f32 to vector<8x64xf32>
    %593 = arith.subf %592, %561 : vector<8x64xf32>
    %594 = arith.mulf %593, %537 : vector<8x64xf32>
    %595 = arith.addf %591, %594 : vector<8x64xf32>
    %596 = arith.mulf %561, %537 : vector<8x64xf32>
    %cst_185 = arith.constant 1.000000e+00 : f32
    %597 = vector.broadcast %cst_185 : f32 to vector<8x64xf32>
    %598 = arith.subf %597, %563 : vector<8x64xf32>
    %599 = arith.mulf %598, %542 : vector<8x64xf32>
    %600 = arith.addf %596, %599 : vector<8x64xf32>
    %601 = arith.mulf %563, %542 : vector<8x64xf32>
    %cst_186 = arith.constant 1.000000e+00 : f32
    %602 = vector.broadcast %cst_186 : f32 to vector<8x64xf32>
    %603 = arith.subf %602, %565 : vector<8x64xf32>
    %604 = arith.mulf %603, %547 : vector<8x64xf32>
    %605 = arith.addf %601, %604 : vector<8x64xf32>
    %606 = tpu.concatenate %311, %570, %575, %580, %585, %590, %595, %600, %605 in 1 : vector<8x64xf32>, vector<8x64xf32>, vector<8x64xf32>, vector<8x64xf32>, vector<8x64xf32>, vector<8x64xf32>, vector<8x64xf32>, vector<8x64xf32>, vector<8x64xf32> -> vector<8x576xf32>
    %c0_187 = arith.constant 0 : index
    %c0_188 = arith.constant 0 : index
    %607 = vector.load %arg3[%c0_187, %c0_188] : memref<576x128xf32, #tpu.memory_space<vmem>>, vector<576x128xf32>
    %cst_189 = arith.constant dense<0.000000e+00> : vector<8x128xf32>
    %608 = tpu.matmul %606, %607, %cst_189 {dimension_numbers = #tpu.dot_dimension_numbers<[1], [0], [0], [1], [0, 0, 1, 1], [], []>} : vector<8x576xf32>, vector<576x128xf32>, vector<8x128xf32> -> vector<8x128xf32>
    %c0_190 = arith.constant 0 : index
    %c0_191 = arith.constant 0 : index
    %609 = vector.load %arg4[%c0_190, %c0_191] : memref<8x128xf32, #tpu.memory_space<vmem>>, vector<8x128xf32>
    tpu.vector_store %arg4[%c0_190, %c0_191], %608 {strides = array<i32>} : memref<8x128xf32, #tpu.memory_space<vmem>>, vector<8x128xf32>,
    return
  }
  func.func @transform_0(%arg0: i32) -> (i32, i32) {
    %c0_i32 = arith.constant 0 : i32
    %c0_i32_0 = arith.constant 0 : i32
    return %arg0, %c0_i32 : i32, i32
  }
  func.func @transform_1(%arg0: i32) -> (i32, i32) {
    %c0_i32 = arith.constant 0 : i32
    %c0_i32_0 = arith.constant 0 : i32
    %c0_i32_1 = arith.constant 0 : i32
    return %c0_i32, %c0_i32_0 : i32, i32
  }
  func.func @transform_2(%arg0: i32) -> (i32, i32) {
    %c0_i32 = arith.constant 0 : i32
    %c0_i32_0 = arith.constant 0 : i32
    %c0_i32_1 = arith.constant 0 : i32
    return %c0_i32, %c0_i32_0 : i32, i32
  }
  func.func @transform_3(%arg0: i32) -> (i32, i32) {
    %c0_i32 = arith.constant 0 : i32
    %c0_i32_0 = arith.constant 0 : i32
    return %arg0, %c0_i32 : i32, i32
  }
}

</mosaic_0001>

<llo_original>
// kernel: tpu_custom_call.1
$region0: #{tpu_custom_call.1}
  #allocation0 [shape = 'u32[]', space=smem, size = 0x4, offset = 0x4, fixed_abs, tag = 'smem constant byte address 0x4 - core index']
  #allocation1 [shape = 'u32[144,128]{1,0:T(1,128)}', space=vmem, size = 0x12000, scoped, tag = 'internal scratch']
  %s0 = inlined_call_operand.vmem [shape: f32[8,64], index: 0, kind: input, shape index: {}]
  %s1 = inlined_call_operand.vmem [shape: f32[576,64], index: 1, kind: input, shape index: {}]
  %s2 = inlined_call_operand.vmem [shape: f32[576,128], index: 2, kind: input, shape index: {}]
  %s3 = inlined_call_operand.hbm [shape: f32[8,128], index: 3, kind: output, shape index: {}]
  %s4 = sld [smem:[#allocation0]]
  $region22: #{tpu_custom_call.1} parent=0
    _
  %s6 = ssub.s32 1, %s4
  %s7 = scalar_select 0, %s6, %s4
  $region1: #{tpu_custom_call.1} parent=0
    #allocation2 [shape = 'u8[4096]{0}', space=vmem, size = 0x1000, scoped, tag = 'output window, operand 0, single buffered']
    #allocation3 [shape = 's32[1]{0}', space=sflag, size = 0x4, scoped, tag = 'scoped memory for tpu_custom_call.1']
    %8 = vsyncpa [#allocation3], 0
    // Predicated region
    $region2: #{tpu_custom_call.1} parent=1 // pred_check
      _
    $region3: #{tpu_custom_call.1} parent=1 // pred_check_branch
      %10 = sbr.rel (0) target = $region5
    $region4: #{tpu_custom_call.1} parent=1 // pred_region
      _
    $region5: #{tpu_custom_call.1} parent=1 // pred_fallthru
      _
    // Predicated region
    $region6: #{tpu_custom_call.1} parent=1 // pred_check
      _
    $region7: #{tpu_custom_call.1} parent=1 // pred_check_branch
      %12 = sbr.rel (0) target = $region9
    $region8: #{tpu_custom_call.1} parent=1 // pred_region
      _
    $region9: #{tpu_custom_call.1} parent=1 // pred_fallthru
      _
    // Predicated region
    $region10: #{tpu_custom_call.1} parent=1 // pred_check
      _
    $region11: #{tpu_custom_call.1} parent=1 // pred_check_branch
      %14 = sbr.rel (0) target = $region13
    $region12: #{tpu_custom_call.1} parent=1 // pred_region
      _
    $region13: #{tpu_custom_call.1} parent=1 // pred_fallthru
      _
    %v15 = vld [vmem:[%s0] sm:$0xff]
    %v16 = vsub.f32 0.0, %v15
    %v17 = vmul.f32 %v16, 1.442695
    %v18 = vpow.pop %v17
    %v19 = vadd.f32 %v18, 1.0
    %v20 = vrcp.pop %v19
    %v21 = vmul.f32 %v15, %v20
    %vm22 = vcmp.ge.f32.partialorder %v15, -2.2
    %vm23 = vcmp.lt.f32.partialorder %v15, -1.8
    %vm24 = vmand %vm22, %vm23
    %v25 = vsel %vm24, 1, 0
    %v26 = vcvt.s32.f32 %v25
    %vm27 = vcmp.ge.f32.partialorder %v15, -1.8
    %vm28 = vcmp.lt.f32.partialorder %v15, -1.4
    %vm29 = vmand %vm27, %vm28
    %v30 = vsel %vm29, 1, 0
    %v31 = vcvt.s32.f32 %v30
    %vm32 = vcmp.ge.f32.partialorder %v15, -1.4
    %vm33 = vcmp.lt.f32.partialorder %v15, -1.0
    %vm34 = vmand %vm32, %vm33
    %v35 = vsel %vm34, 1, 0
    %v36 = vcvt.s32.f32 %v35
    %vm37 = vcmp.ge.f32.partialorder %v15, -1.0
    %vm38 = vcmp.lt.f32.partialorder %v15, -0.6
    %vm39 = vmand %vm37, %vm38
    %v40 = vsel %vm39, 1, 0
    %v41 = vcvt.s32.f32 %v40
    %vm42 = vcmp.ge.f32.partialorder %v15, -0.6
    %vm43 = vcmp.lt.f32.partialorder %v15, -0.2
    %vm44 = vmand %vm42, %vm43
    %v45 = vsel %vm44, 1, 0
    %v46 = vcvt.s32.f32 %v45
    %vm47 = vcmp.ge.f32.partialorder %v15, -0.2
    %vm48 = vcmp.lt.f32.partialorder %v15, 0.2
    %vm49 = vmand %vm47, %vm48
    %v50 = vsel %vm49, 1, 0
    %v51 = vcvt.s32.f32 %v50
    %vm52 = vcmp.ge.f32.partialorder %v15, 0.2
    %vm53 = vcmp.lt.f32.partialorder %v15, 0.6
    %vm54 = vmand %vm52, %vm53
    %v55 = vsel %vm54, 1, 0
    %v56 = vcvt.s32.f32 %v55
    %vm57 = vcmp.ge.f32.partialorder %v15, 0.6
    %vm58 = vcmp.lt.f32.partialorder %v15, 1.0
    %vm59 = vmand %vm57, %vm58
    %v60 = vsel %vm59, 1, 0
    %v61 = vcvt.s32.f32 %v60
    %vm62 = vcmp.ge.f32.partialorder %v15, 1.0
    %vm63 = vcmp.lt.f32.partialorder %v15, 1.4
    %vm64 = vmand %vm62, %vm63
    %v65 = vsel %vm64, 1, 0
    %v66 = vcvt.s32.f32 %v65
    %vm67 = vcmp.ge.f32.partialorder %v15, 1.4
    %vm68 = vcmp.lt.f32.partialorder %v15, 1.8
    %vm69 = vmand %vm67, %vm68
    %v70 = vsel %vm69, 1, 0
    %v71 = vcvt.s32.f32 %v70
    %vm72 = vcmp.ge.f32.partialorder %v15, 1.8
    %vm73 = vcmp.lt.f32.partialorder %v15, 2.2
    %vm74 = vmand %vm72, %vm73
    %v75 = vsel %vm74, 1, 0
    %v76 = vcvt.s32.f32 %v75
    %v77 = vsub.f32 %v15, -2.2
    %v78 = vsub.f32 %v15, -1.8
    %v79 = vsub.f32 %v15, -1.4
    %v80 = vsub.f32 %v15, -1.0
    %v81 = vsub.f32 %v15, -0.6
    %v82 = vsub.f32 %v15, -0.2
    %v83 = vsub.f32 %v15, 0.2
    %v84 = vsub.f32 %v15, 0.6
    %v85 = vsub.f32 %v15, 1.0
    %v86 = vsub.f32 %v15, 1.4
    %v87 = vsub.f32 %v15, 1.8
    %v88 = vmul.f32 %v77, 2.5
    %v89 = vmul.f32 %v78, 2.5
    %v90 = vmul.f32 %v79, 2.5
    %v91 = vmul.f32 %v80, 2.5
    %v92 = vmul.f32 %v81, 2.5
    %v93 = vmul.f32 %v82, 2.5
    %v94 = vmul.f32 %v83, 2.5
    %v95 = vmul.f32 %v84, 2.5
    %v96 = vmul.f32 %v85, 2.5
    %v97 = vmul.f32 %v86, 2.5
    %v98 = vmul.f32 %v87, 2.5
    %v99 = vmul.f32 %v88, %v26
    %v100 = vsub.f32 1.0, %v89
    %v101 = vmul.f32 %v100, %v31
    %v102 = vadd.f32 %v99, %v101
    %v103 = vmul.f32 %v89, %v31
    %v104 = vsub.f32 1.0, %v90
    %v105 = vmul.f32 %v104, %v36
    %v106 = vadd.f32 %v103, %v105
    %v107 = vmul.f32 %v90, %v36
    %v108 = vsub.f32 1.0, %v91
    %v109 = vmul.f32 %v108, %v41
    %v110 = vadd.f32 %v107, %v109
    %v111 = vmul.f32 %v91, %v41
    %v112 = vsub.f32 1.0, %v92
    %v113 = vmul.f32 %v112, %v46
    %v114 = vadd.f32 %v111, %v113
    %v115 = vmul.f32 %v92, %v46
    %v116 = vsub.f32 1.0, %v93
    %v117 = vmul.f32 %v116, %v51
    %v118 = vadd.f32 %v115, %v117
    %v119 = vmul.f32 %v93, %v51
    %v120 = vsub.f32 1.0, %v94
    %v121 = vmul.f32 %v120, %v56
    %v122 = vadd.f32 %v119, %v121
    %v123 = vmul.f32 %v94, %v56
    %v124 = vsub.f32 1.0, %v95
    %v125 = vmul.f32 %v124, %v61
    %v126 = vadd.f32 %v123, %v125
    %v127 = vmul.f32 %v95, %v61
    %v128 = vsub.f32 1.0, %v96
    %v129 = vmul.f32 %v128, %v66
    %v130 = vadd.f32 %v127, %v129
    %v131 = vmul.f32 %v96, %v66
    %v132 = vsub.f32 1.0, %v97
    %v133 = vmul.f32 %v132, %v71
    %v134 = vadd.f32 %v131, %v133
    %v135 = vmul.f32 %v97, %v71
    %v136 = vsub.f32 1.0, %v98
    %v137 = vmul.f32 %v136, %v76
    %v138 = vadd.f32 %v135, %v137
    %v139 = vmul.f32 %v77, 1.25
    %v140 = vmul.f32 %v78, 1.25
    %v141 = vmul.f32 %v79, 1.25
    %v142 = vmul.f32 %v80, 1.25
    %v143 = vmul.f32 %v81, 1.25
    %v144 = vmul.f32 %v82, 1.25
    %v145 = vmul.f32 %v83, 1.25
    %v146 = vmul.f32 %v84, 1.25
    %v147 = vmul.f32 %v85, 1.25
    %v148 = vmul.f32 %v86, 1.25
    %v149 = vmul.f32 %v139, %v102
    %v150 = vsub.f32 1.0, %v140
    %v151 = vmul.f32 %v150, %v106
    %v152 = vadd.f32 %v149, %v151
    %v153 = vmul.f32 %v140, %v106
    %v154 = vsub.f32 1.0, %v141
    %v155 = vmul.f32 %v154, %v110
    %v156 = vadd.f32 %v153, %v155
    %v157 = vmul.f32 %v141, %v110
    %v158 = vsub.f32 1.0, %v142
    %v159 = vmul.f32 %v158, %v114
    %v160 = vadd.f32 %v157, %v159
    %v161 = vmul.f32 %v142, %v114
    %v162 = vsub.f32 1.0, %v143
    %v163 = vmul.f32 %v162, %v118
    %v164 = vadd.f32 %v161, %v163
    %v165 = vmul.f32 %v143, %v118
    %v166 = vsub.f32 1.0, %v144
    %v167 = vmul.f32 %v166, %v122
    %v168 = vadd.f32 %v165, %v167
    %v169 = vmul.f32 %v144, %v122
    %v170 = vsub.f32 1.0, %v145
    %v171 = vmul.f32 %v170, %v126
    %v172 = vadd.f32 %v169, %v171
    %v173 = vmul.f32 %v145, %v126
    %v174 = vsub.f32 1.0, %v146
    %v175 = vmul.f32 %v174, %v130
    %v176 = vadd.f32 %v173, %v175
    %v177 = vmul.f32 %v146, %v130
    %v178 = vsub.f32 1.0, %v147
    %v179 = vmul.f32 %v178, %v134
    %v180 = vadd.f32 %v177, %v179
    %v181 = vmul.f32 %v147, %v134
    %v182 = vsub.f32 1.0, %v148
    %v183 = vmul.f32 %v182, %v138
    %v184 = vadd.f32 %v181, %v183
    %v185 = vmul.f32 %v77, 0.8333333
    %v186 = vmul.f32 %v78, 0.8333333
    %v187 = vmul.f32 %v79, 0.8333333
    %v188 = vmul.f32 %v80, 0.8333333
    %v189 = vmul.f32 %v81, 0.8333333
    %v190 = vmul.f32 %v82, 0.8333333
    %v191 = vmul.f32 %v83, 0.8333333
    %v192 = vmul.f32 %v84, 0.8333333
    %v193 = vmul.f32 %v85, 0.8333333
    %v194 = vmul.f32 %v185, %v152
    %v195 = vsub.f32 1.0, %v186
    %v196 = vmul.f32 %v195, %v156
    %v197 = vadd.f32 %v194, %v196
    %v198 = vmul.f32 %v186, %v156
    %v199 = vsub.f32 1.0, %v187
    %v200 = vmul.f32 %v199, %v160
    %v201 = vadd.f32 %v198, %v200
    %v202 = vmul.f32 %v187, %v160
    %v203 = vsub.f32 1.0, %v188
    %v204 = vmul.f32 %v203, %v164
    %v205 = vadd.f32 %v202, %v204
    %v206 = vmul.f32 %v188, %v164
    %v207 = vsub.f32 1.0, %v189
    %v208 = vmul.f32 %v207, %v168
    %v209 = vadd.f32 %v206, %v208
    %v210 = vmul.f32 %v189, %v168
    %v211 = vsub.f32 1.0, %v190
    %v212 = vmul.f32 %v211, %v172
    %v213 = vadd.f32 %v210, %v212
    %v214 = vmul.f32 %v190, %v172
    %v215 = vsub.f32 1.0, %v191
    %v216 = vmul.f32 %v215, %v176
    %v217 = vadd.f32 %v214, %v216
    %v218 = vmul.f32 %v191, %v176
    %v219 = vsub.f32 1.0, %v192
    %v220 = vmul.f32 %v219, %v180
    %v221 = vadd.f32 %v218, %v220
    %v222 = vmul.f32 %v192, %v180
    %v223 = vsub.f32 1.0, %v193
    %v224 = vmul.f32 %v223, %v184
    %v225 = vadd.f32 %v222, %v224
    %227 = vrot.lane.b32.xlu0 %v197, 64
    %v228 = vpop.permute.xlu0 %227
    %231 = vrot.lane.b32.xlu0 %v205, 64
    %v232 = vpop.permute.xlu0 %231
    %235 = vrot.lane.b32.xlu0 %v213, 64
    %v236 = vpop.permute.xlu0 %235
    %239 = vrot.lane.b32.xlu0 %v221, 64
    %v240 = vpop.permute.xlu0 %239
    %vm242 = vcmask 523264
    %v243 = vsel %vm242, %v21, %v228
    %v244 = vsel %vm242, %v201, %v232
    %v245 = vsel %vm242, %v209, %v236
    %v246 = vsel %vm242, %v217, %v240
    %v247 = vld [vmem:[%s1] sm:$0xff]
    %v248 = vld [vmem:[%s1 + $0x8] sm:$0xff]
    %v249 = vld [vmem:[%s1 + $0x10] sm:$0xff]
    %v250 = vld [vmem:[%s1 + $0x18] sm:$0xff]
    %v251 = vld [vmem:[%s1 + $0x20] sm:$0xff]
    %v252 = vld [vmem:[%s1 + $0x28] sm:$0xff]
    %v253 = vld [vmem:[%s1 + $0x30] sm:$0xff]
    %v254 = vld [vmem:[%s1 + $0x38] sm:$0xff]
    %v255 = vld [vmem:[%s1 + $0x40] sm:$0xff]
    %v256 = vld [vmem:[%s1 + $0x48] sm:$0xff]
    %v257 = vld [vmem:[%s1 + $0x50] sm:$0xff]
    %v258 = vld [vmem:[%s1 + $0x58] sm:$0xff]
    %v259 = vld [vmem:[%s1 + $0x60] sm:$0xff]
    %v260 = vld [vmem:[%s1 + $0x68] sm:$0xff]
    %v261 = vld [vmem:[%s1 + $0x70] sm:$0xff]
    %v262 = vld [vmem:[%s1 + $0x78] sm:$0xff]
    %v263 = vld [vmem:[%s1 + $0x80] sm:$0xff]
    %v264 = vld [vmem:[%s1 + $0x88] sm:$0xff]
    %v265 = vld [vmem:[%s1 + $0x90] sm:$0xff]
    %v266 = vld [vmem:[%s1 + $0x98] sm:$0xff]
    %v267 = vld [vmem:[%s1 + $0xa0] sm:$0xff]
    %v268 = vld [vmem:[%s1 + $0xa8] sm:$0xff]
    %v269 = vld [vmem:[%s1 + $0xb0] sm:$0xff]
    %v270 = vld [vmem:[%s1 + $0xb8] sm:$0xff]
    %v271 = vld [vmem:[%s1 + $0xc0] sm:$0xff]
    %v272 = vld [vmem:[%s1 + $0xc8] sm:$0xff]
    %v273 = vld [vmem:[%s1 + $0xd0] sm:$0xff]
    %v274 = vld [vmem:[%s1 + $0xd8] sm:$0xff]
    %v275 = vld [vmem:[%s1 + $0xe0] sm:$0xff]
    %v276 = vld [vmem:[%s1 + $0xe8] sm:$0xff]
    %v277 = vld [vmem:[%s1 + $0xf0] sm:$0xff]
    %v278 = vld [vmem:[%s1 + $0xf8] sm:$0xff]
    %v279 = vld [vmem:[%s1 + $0x100] sm:$0xff]
    %v280 = vld [vmem:[%s1 + $0x108] sm:$0xff]
    %v281 = vld [vmem:[%s1 + $0x110] sm:$0xff]
    %v282 = vld [vmem:[%s1 + $0x118] sm:$0xff]
    %v283 = vld [vmem:[%s1 + $0x120] sm:$0xff]
    %v284 = vld [vmem:[%s1 + $0x128] sm:$0xff]
    %v285 = vld [vmem:[%s1 + $0x130] sm:$0xff]
    %v286 = vld [vmem:[%s1 + $0x138] sm:$0xff]
    %v287 = vld [vmem:[%s1 + $0x140] sm:$0xff]
    %v288 = vld [vmem:[%s1 + $0x148] sm:$0xff]
    %v289 = vld [vmem:[%s1 + $0x150] sm:$0xff]
    %v290 = vld [vmem:[%s1 + $0x158] sm:$0xff]
    %v291 = vld [vmem:[%s1 + $0x160] sm:$0xff]
    %v292 = vld [vmem:[%s1 + $0x168] sm:$0xff]
    %v293 = vld [vmem:[%s1 + $0x170] sm:$0xff]
    %v294 = vld [vmem:[%s1 + $0x178] sm:$0xff]
    %v295 = vld [vmem:[%s1 + $0x180] sm:$0xff]
    %v296 = vld [vmem:[%s1 + $0x188] sm:$0xff]
    %v297 = vld [vmem:[%s1 + $0x190] sm:$0xff]
    %v298 = vld [vmem:[%s1 + $0x198] sm:$0xff]
    %v299 = vld [vmem:[%s1 + $0x1a0] sm:$0xff]
    %v300 = vld [vmem:[%s1 + $0x1a8] sm:$0xff]
    %v301 = vld [vmem:[%s1 + $0x1b0] sm:$0xff]
    %v302 = vld [vmem:[%s1 + $0x1b8] sm:$0xff]
    %v303 = vld [vmem:[%s1 + $0x1c0] sm:$0xff]
    %v304 = vld [vmem:[%s1 + $0x1c8] sm:$0xff]
    %v305 = vld [vmem:[%s1 + $0x1d0] sm:$0xff]
    %v306 = vld [vmem:[%s1 + $0x1d8] sm:$0xff]
    %v307 = vld [vmem:[%s1 + $0x1e0] sm:$0xff]
    %v308 = vld [vmem:[%s1 + $0x1e8] sm:$0xff]
    %v309 = vld [vmem:[%s1 + $0x1f0] sm:$0xff]
    %v310 = vld [vmem:[%s1 + $0x1f8] sm:$0xff]
    %v311 = vld [vmem:[%s1 + $0x200] sm:$0xff]
    %v312 = vld [vmem:[%s1 + $0x208] sm:$0xff]
    %v313 = vld [vmem:[%s1 + $0x210] sm:$0xff]
    %v314 = vld [vmem:[%s1 + $0x218] sm:$0xff]
    %v315 = vld [vmem:[%s1 + $0x220] sm:$0xff]
    %v316 = vld [vmem:[%s1 + $0x228] sm:$0xff]
    %v317 = vld [vmem:[%s1 + $0x230] sm:$0xff]
    %v318 = vld [vmem:[%s1 + $0x238] sm:$0xff]
    %v320 = vsel %vm242, %v225, 0
    %322 = vmatprep.subr.mxu0 0.0
    %323 = vmatpush1.msra.mxu0 %v262
    %324 = vmatprep.subr.mxu0 0.0
    %325 = vmatpush1.msra.mxu0 %v261
    %326 = vmatprep.subr.mxu0 0.0
    %327 = vmatpush1.msra.mxu0 %v260
    %328 = vmatprep.subr.mxu0 0.0
    %329 = vmatpush1.msra.mxu0 %v259
    %330 = vmatprep.subr.mxu0 0.0
    %331 = vmatpush1.msra.mxu0 %v258
    %332 = vmatprep.subr.mxu0 0.0
    %333 = vmatpush1.msra.mxu0 %v257
    %334 = vmatprep.subr.mxu0 0.0
    %335 = vmatpush1.msra.mxu0 %v256
    %336 = vmatprep.subr.mxu0 0.0
    %337 = vmatpush1.msra.mxu0 %v255
    %338 = vmatprep.subr.mxu0 0.0
    %339 = vmatpush1.msra.mxu0 %v254
    %340 = vmatprep.subr.mxu0 0.0
    %341 = vmatpush1.msra.mxu0 %v253
    %342 = vmatprep.subr.mxu0 0.0
    %343 = vmatpush1.msra.mxu0 %v252
    %344 = vmatprep.subr.mxu0 0.0
    %345 = vmatpush1.msra.mxu0 %v251
    %346 = vmatprep.subr.mxu0 0.0
    %347 = vmatpush1.msra.mxu0 %v250
    %348 = vmatprep.subr.mxu0 0.0
    %349 = vmatpush1.msra.mxu0 %v249
    %350 = vmatprep.subr.mxu0 0.0
    %351 = vmatpush1.msra.mxu0 %v248
    %352 = vmatprep.subr.mxu0 0.0
    %353 = vmatpush1.msra.mxu0 %v247
    %354 = vmatprep.subr.mxu0 0.0
    %355 = vmatpush2.msra.mxu0 %v278
    %356 = vmatprep.subr.mxu0 0.0
    %357 = vmatpush2.msra.mxu0 %v277
    %358 = vmatprep.subr.mxu0 0.0
    %359 = vmatpush2.msra.mxu0 %v276
    %360 = vmatprep.subr.mxu0 0.0
    %361 = vmatpush2.msra.mxu0 %v275
    %362 = vmatprep.subr.mxu0 0.0
    %363 = vmatpush2.msra.mxu0 %v274
    %364 = vmatprep.subr.mxu0 0.0
    %365 = vmatpush2.msra.mxu0 %v273
    %366 = vmatprep.subr.mxu0 0.0
    %367 = vmatpush2.msra.mxu0 %v272
    %368 = vmatprep.subr.mxu0 0.0
    %369 = vmatpush2.msra.mxu0 %v271
    %370 = vmatprep.subr.mxu0 0.0
    %371 = vmatpush2.msra.mxu0 %v270
    %372 = vmatprep.subr.mxu0 0.0
    %373 = vmatpush2.msra.mxu0 %v269
    %374 = vmatprep.subr.mxu0 0.0
    %375 = vmatpush2.msra.mxu0 %v268
    %376 = vmatprep.subr.mxu0 0.0
    %377 = vmatpush2.msra.mxu0 %v267
    %378 = vmatprep.subr.mxu0 0.0
    %379 = vmatpush2.msra.mxu0 %v266
    %380 = vmatprep.subr.mxu0 0.0
    %381 = vmatpush2.msra.mxu0 %v265
    %382 = vmatprep.subr.mxu0 0.0
    %383 = vmatpush2.msra.mxu0 %v264
    %384 = vmatprep.subr.mxu0 0.0
    %385 = vmatpush2.msra.mxu0 %v263
    %386 = vmatprep.mubr.f32.mxu0 %v244
    %387 = vmatmul.mubr.f32.gmra.mxu0 %v243
    %v388 = vpop.f32.mrf.mxu0
    %v389 = vadd.f32 0.0, %v388
    %v390 = vpop.f32.mrf.mxu0
    %391 = vdwg.mxu0
    %392 = vmatprep.subr.mxu0 0.0
    %393 = vmatpush1.msra.mxu0 %v294
    %394 = vmatprep.subr.mxu0 0.0
    %395 = vmatpush1.msra.mxu0 %v293
    %396 = vmatprep.subr.mxu0 0.0
    %397 = vmatpush1.msra.mxu0 %v292
    %398 = vmatprep.subr.mxu0 0.0
    %399 = vmatpush1.msra.mxu0 %v291
    %400 = vmatprep.subr.mxu0 0.0
    %401 = vmatpush1.msra.mxu0 %v290
    %402 = vmatprep.subr.mxu0 0.0
    %403 = vmatpush1.msra.mxu0 %v289
    %404 = vmatprep.subr.mxu0 0.0
    %405 = vmatpush1.msra.mxu0 %v288
    %406 = vmatprep.subr.mxu0 0.0
    %407 = vmatpush1.msra.mxu0 %v287
    %408 = vmatprep.subr.mxu0 0.0
    %409 = vmatpush1.msra.mxu0 %v286
    %410 = vmatprep.subr.mxu0 0.0
    %411 = vmatpush1.msra.mxu0 %v285
    %412 = vmatprep.subr.mxu0 0.0
    %413 = vmatpush1.msra.mxu0 %v284
    %414 = vmatprep.subr.mxu0 0.0
    %415 = vmatpush1.msra.mxu0 %v283
    %416 = vmatprep.subr.mxu0 0.0
    %417 = vmatpush1.msra.mxu0 %v282
    %418 = vmatprep.subr.mxu0 0.0
    %419 = vmatpush1.msra.mxu0 %v281
    %420 = vmatprep.subr.mxu0 0.0
    %421 = vmatpush1.msra.mxu0 %v280
    %422 = vmatprep.subr.mxu0 0.0
    %423 = vmatpush1.msra.mxu0 %v279
    %424 = vmatprep.subr.mxu0 0.0
    %425 = vmatpush2.msra.mxu0 %v310
    %426 = vmatprep.subr.mxu0 0.0
    %427 = vmatpush2.msra.mxu0 %v309
    %428 = vmatprep.subr.mxu0 0.0
    %429 = vmatpush2.msra.mxu0 %v308
    %430 = vmatprep.subr.mxu0 0.0
    %431 = vmatpush2.msra.mxu0 %v307
    %432 = vmatprep.subr.mxu0 0.0
    %433 = vmatpush2.msra.mxu0 %v306
    %434 = vmatprep.subr.mxu0 0.0
    %435 = vmatpush2.msra.mxu0 %v305
    %436 = vmatprep.subr.mxu0 0.0
    %437 = vmatpush2.msra.mxu0 %v304
    %438 = vmatprep.subr.mxu0 0.0
    %439 = vmatpush2.msra.mxu0 %v303
    %440 = vmatprep.subr.mxu0 0.0
    %441 = vmatpush2.msra.mxu0 %v302
    %442 = vmatprep.subr.mxu0 0.0
    %443 = vmatpush2.msra.mxu0 %v301
    %444 = vmatprep.subr.mxu0 0.0
    %445 = vmatpush2.msra.mxu0 %v300
    %446 = vmatprep.subr.mxu0 0.0
    %447 = vmatpush2.msra.mxu0 %v299
    %448 = vmatprep.subr.mxu0 0.0
    %449 = vmatpush2.msra.mxu0 %v298
    %450 = vmatprep.subr.mxu0 0.0
    %451 = vmatpush2.msra.mxu0 %v297
    %452 = vmatprep.subr.mxu0 0.0
    %453 = vmatpush2.msra.mxu0 %v296
    %454 = vmatprep.subr.mxu0 0.0
    %455 = vmatpush2.msra.mxu0 %v295
    %456 = vmatprep.mubr.f32.mxu0 %v246
    %457 = vmatmul.mubr.f32.gmra.mxu0 %v245
    %v458 = vpop.f32.mrf.mxu0
    %v459 = vadd.f32 %v389, %v458
    %v460 = vpop.f32.mrf.mxu0
    %461 = vdwg.mxu0
    %462 = vmatprep.subr.mxu0 0.0
    %463 = vmatpush1.msra.mxu0 0.0
    %464 = vmatprep.subr.mxu0 0.0
    %465 = vmatpush1.msra.mxu0 0.0
    %466 = vmatprep.subr.mxu0 0.0
    %467 = vmatpush1.msra.mxu0 0.0
    %468 = vmatprep.subr.mxu0 0.0
    %469 = vmatpush1.msra.mxu0 0.0
    %470 = vmatprep.subr.mxu0 0.0
    %471 = vmatpush1.msra.mxu0 0.0
    %472 = vmatprep.subr.mxu0 0.0
    %473 = vmatpush1.msra.mxu0 0.0
    %474 = vmatprep.subr.mxu0 0.0
    %475 = vmatpush1.msra.mxu0 0.0
    %476 = vmatprep.subr.mxu0 0.0
    %477 = vmatpush1.msra.mxu0 0.0
    %478 = vmatprep.subr.mxu0 0.0
    %479 = vmatpush1.msra.mxu0 %v318
    %480 = vmatprep.subr.mxu0 0.0
    %481 = vmatpush1.msra.mxu0 %v317
    %482 = vmatprep.subr.mxu0 0.0
    %483 = vmatpush1.msra.mxu0 %v316
    %484 = vmatprep.subr.mxu0 0.0
    %485 = vmatpush1.msra.mxu0 %v315
    %486 = vmatprep.subr.mxu0 0.0
    %487 = vmatpush1.msra.mxu0 %v314
    %488 = vmatprep.subr.mxu0 0.0
    %489 = vmatpush1.msra.mxu0 %v313
    %490 = vmatprep.subr.mxu0 0.0
    %491 = vmatpush1.msra.mxu0 %v312
    %492 = vmatprep.subr.mxu0 0.0
    %493 = vmatpush1.msra.mxu0 %v311
    %494 = vmatprep.subr.mxu0 0.0
    %495 = vmatpush2.msra.mxu0 0.0
    %496 = vmatprep.subr.mxu0 0.0
    %497 = vmatpush2.msra.mxu0 0.0
    %498 = vmatprep.subr.mxu0 0.0
    %499 = vmatpush2.msra.mxu0 0.0
    %500 = vmatprep.subr.mxu0 0.0
    %501 = vmatpush2.msra.mxu0 0.0
    %502 = vmatprep.subr.mxu0 0.0
    %503 = vmatpush2.msra.mxu0 0.0
    %504 = vmatprep.subr.mxu0 0.0
    %505 = vmatpush2.msra.mxu0 0.0
    %506 = vmatprep.subr.mxu0 0.0
    %507 = vmatpush2.msra.mxu0 0.0
    %508 = vmatprep.subr.mxu0 0.0
    %509 = vmatpush2.msra.mxu0 0.0
    %510 = vmatprep.subr.mxu0 0.0
    %511 = vmatpush2.msra.mxu0 0.0
    %512 = vmatprep.subr.mxu0 0.0
    %513 = vmatpush2.msra.mxu0 0.0
    %514 = vmatprep.subr.mxu0 0.0
    %515 = vmatpush2.msra.mxu0 0.0
    %516 = vmatprep.subr.mxu0 0.0
    %517 = vmatpush2.msra.mxu0 0.0
    %518 = vmatprep.subr.mxu0 0.0
    %519 = vmatpush2.msra.mxu0 0.0
    %520 = vmatprep.subr.mxu0 0.0
    %521 = vmatpush2.msra.mxu0 0.0
    %522 = vmatprep.subr.mxu0 0.0
    %523 = vmatpush2.msra.mxu0 0.0
    %524 = vmatprep.subr.mxu0 0.0
    %525 = vmatpush2.msra.mxu0 0.0
    %526 = vmatprep.mubr.f32.mxu0 0.0
    %527 = vmatmul.mubr.f32.gmra.mxu0 %v320
    %v528 = vpop.f32.mrf.mxu0
    %v529 = vadd.f32 %v459, %v528
    %v530 = vpop.f32.mrf.mxu0
    %531 = vdwg.mxu0
    %v532 = vsub.f32 0.0, %v529
    %v533 = vmul.f32 %v532, 1.442695
    %v534 = vpow.pop %v533
    %v535 = vadd.f32 %v534, 1.0
    %v536 = vrcp.pop %v535
    %v537 = vmul.f32 %v529, %v536
    %vm538 = vcmp.ge.f32.partialorder %v529, -2.2
    %vm539 = vcmp.lt.f32.partialorder %v529, -1.8
    %vm540 = vmand %vm538, %vm539
    %v541 = vsel %vm540, 1, 0
    %v542 = vcvt.s32.f32 %v541
    %vm543 = vcmp.ge.f32.partialorder %v529, -1.8
    %vm544 = vcmp.lt.f32.partialorder %v529, -1.4
    %vm545 = vmand %vm543, %vm544
    %v546 = vsel %vm545, 1, 0
    %v547 = vcvt.s32.f32 %v546
    %vm548 = vcmp.ge.f32.partialorder %v529, -1.4
    %vm549 = vcmp.lt.f32.partialorder %v529, -1.0
    %vm550 = vmand %vm548, %vm549
    %v551 = vsel %vm550, 1, 0
    %v552 = vcvt.s32.f32 %v551
    %vm553 = vcmp.ge.f32.partialorder %v529, -1.0
    %vm554 = vcmp.lt.f32.partialorder %v529, -0.6
    %vm555 = vmand %vm553, %vm554
    %v556 = vsel %vm555, 1, 0
    %v557 = vcvt.s32.f32 %v556
    %vm558 = vcmp.ge.f32.partialorder %v529, -0.6
    %vm559 = vcmp.lt.f32.partialorder %v529, -0.2
    %vm560 = vmand %vm558, %vm559
    %v561 = vsel %vm560, 1, 0
    %v562 = vcvt.s32.f32 %v561
    %vm563 = vcmp.ge.f32.partialorder %v529, -0.2
    %vm564 = vcmp.lt.f32.partialorder %v529, 0.2
    %vm565 = vmand %vm563, %vm564
    %v566 = vsel %vm565, 1, 0
    %v567 = vcvt.s32.f32 %v566
    %vm568 = vcmp.ge.f32.partialorder %v529, 0.2
    %vm569 = vcmp.lt.f32.partialorder %v529, 0.6
    %vm570 = vmand %vm568, %vm569
    %v571 = vsel %vm570, 1, 0
    %v572 = vcvt.s32.f32 %v571
    %vm573 = vcmp.ge.f32.partialorder %v529, 0.6
    %vm574 = vcmp.lt.f32.partialorder %v529, 1.0
    %vm575 = vmand %vm573, %vm574
    %v576 = vsel %vm575, 1, 0
    %v577 = vcvt.s32.f32 %v576
    %vm578 = vcmp.ge.f32.partialorder %v529, 1.0
    %vm579 = vcmp.lt.f32.partialorder %v529, 1.4
    %vm580 = vmand %vm578, %vm579
    %v581 = vsel %vm580, 1, 0
    %v582 = vcvt.s32.f32 %v581
    %vm583 = vcmp.ge.f32.partialorder %v529, 1.4
    %vm584 = vcmp.lt.f32.partialorder %v529, 1.8
    %vm585 = vmand %vm583, %vm584
    %v586 = vsel %vm585, 1, 0
    %v587 = vcvt.s32.f32 %v586
    %vm588 = vcmp.ge.f32.partialorder %v529, 1.8
    %vm589 = vcmp.lt.f32.partialorder %v529, 2.2
    %vm590 = vmand %vm588, %vm589
    %v591 = vsel %vm590, 1, 0
    %v592 = vcvt.s32.f32 %v591
    %v593 = vsub.f32 %v529, -2.2
    %v594 = vsub.f32 %v529, -1.8
    %v595 = vsub.f32 %v529, -1.4
    %v596 = vsub.f32 %v529, -1.0
    %v597 = vsub.f32 %v529, -0.6
    %v598 = vsub.f32 %v529, -0.2
    %v599 = vsub.f32 %v529, 0.2
    %v600 = vsub.f32 %v529, 0.6
    %v601 = vsub.f32 %v529, 1.0
    %v602 = vsub.f32 %v529, 1.4
    %v603 = vsub.f32 %v529, 1.8
    %v604 = vmul.f32 %v593, 2.5
    %v605 = vmul.f32 %v594, 2.5
    %v606 = vmul.f32 %v595, 2.5
    %v607 = vmul.f32 %v596, 2.5
    %v608 = vmul.f32 %v597, 2.5
    %v609 = vmul.f32 %v598, 2.5
    %v610 = vmul.f32 %v599, 2.5
    %v611 = vmul.f32 %v600, 2.5
    %v612 = vmul.f32 %v601, 2.5
    %v613 = vmul.f32 %v602, 2.5
    %v614 = vmul.f32 %v603, 2.5
    %v615 = vmul.f32 %v604, %v542
    %v616 = vsub.f32 1.0, %v605
    %v617 = vmul.f32 %v616, %v547
    %v618 = vadd.f32 %v615, %v617
    %v619 = vmul.f32 %v605, %v547
    %v620 = vsub.f32 1.0, %v606
    %v621 = vmul.f32 %v620, %v552
    %v622 = vadd.f32 %v619, %v621
    %v623 = vmul.f32 %v606, %v552
    %v624 = vsub.f32 1.0, %v607
    %v625 = vmul.f32 %v624, %v557
    %v626 = vadd.f32 %v623, %v625
    %v627 = vmul.f32 %v607, %v557
    %v628 = vsub.f32 1.0, %v608
    %v629 = vmul.f32 %v628, %v562
    %v630 = vadd.f32 %v627, %v629
    %v631 = vmul.f32 %v608, %v562
    %v632 = vsub.f32 1.0, %v609
    %v633 = vmul.f32 %v632, %v567
    %v634 = vadd.f32 %v631, %v633
    %v635 = vmul.f32 %v609, %v567
    %v636 = vsub.f32 1.0, %v610
    %v637 = vmul.f32 %v636, %v572
    %v638 = vadd.f32 %v635, %v637
    %v639 = vmul.f32 %v610, %v572
    %v640 = vsub.f32 1.0, %v611
    %v641 = vmul.f32 %v640, %v577
    %v642 = vadd.f32 %v639, %v641
    %v643 = vmul.f32 %v611, %v577
    %v644 = vsub.f32 1.0, %v612
    %v645 = vmul.f32 %v644, %v582
    %v646 = vadd.f32 %v643, %v645
    %v647 = vmul.f32 %v612, %v582
    %v648 = vsub.f32 1.0, %v613
    %v649 = vmul.f32 %v648, %v587
    %v650 = vadd.f32 %v647, %v649
    %v651 = vmul.f32 %v613, %v587
    %v652 = vsub.f32 1.0, %v614
    %v653 = vmul.f32 %v652, %v592
    %v654 = vadd.f32 %v651, %v653
    %v655 = vmul.f32 %v593, 1.25
    %v656 = vmul.f32 %v594, 1.25
    %v657 = vmul.f32 %v595, 1.25
    %v658 = vmul.f32 %v596, 1.25
    %v659 = vmul.f32 %v597, 1.25
    %v660 = vmul.f32 %v598, 1.25
    %v661 = vmul.f32 %v599, 1.25
    %v662 = vmul.f32 %v600, 1.25
    %v663 = vmul.f32 %v601, 1.25
    %v664 = vmul.f32 %v602, 1.25
    %v665 = vmul.f32 %v655, %v618
    %v666 = vsub.f32 1.0, %v656
    %v667 = vmul.f32 %v666, %v622
    %v668 = vadd.f32 %v665, %v667
    %v669 = vmul.f32 %v656, %v622
    %v670 = vsub.f32 1.0, %v657
    %v671 = vmul.f32 %v670, %v626
    %v672 = vadd.f32 %v669, %v671
    %v673 = vmul.f32 %v657, %v626
    %v674 = vsub.f32 1.0, %v658
    %v675 = vmul.f32 %v674, %v630
    %v676 = vadd.f32 %v673, %v675
    %v677 = vmul.f32 %v658, %v630
    %v678 = vsub.f32 1.0, %v659
    %v679 = vmul.f32 %v678, %v634
    %v680 = vadd.f32 %v677, %v679
    %v681 = vmul.f32 %v659, %v634
    %v682 = vsub.f32 1.0, %v660
    %v683 = vmul.f32 %v682, %v638
    %v684 = vadd.f32 %v681, %v683
    %v685 = vmul.f32 %v660, %v638
    %v686 = vsub.f32 1.0, %v661
    %v687 = vmul.f32 %v686, %v642
    %v688 = vadd.f32 %v685, %v687
    %v689 = vmul.f32 %v661, %v642
    %v690 = vsub.f32 1.0, %v662
    %v691 = vmul.f32 %v690, %v646
    %v692 = vadd.f32 %v689, %v691
    %v693 = vmul.f32 %v662, %v646
    %v694 = vsub.f32 1.0, %v663
    %v695 = vmul.f32 %v694, %v650
    %v696 = vadd.f32 %v693, %v695
    %v697 = vmul.f32 %v663, %v650
    %v698 = vsub.f32 1.0, %v664
    %v699 = vmul.f32 %v698, %v654
    %v700 = vadd.f32 %v697, %v699
    %v701 = vmul.f32 %v593, 0.8333333
    %v702 = vmul.f32 %v594, 0.8333333
    %v703 = vmul.f32 %v595, 0.8333333
    %v704 = vmul.f32 %v596, 0.8333333
    %v705 = vmul.f32 %v597, 0.8333333
    %v706 = vmul.f32 %v598, 0.8333333
    %v707 = vmul.f32 %v599, 0.8333333
    %v708 = vmul.f32 %v600, 0.8333333
    %v709 = vmul.f32 %v601, 0.8333333
    %v710 = vmul.f32 %v701, %v668
    %v711 = vsub.f32 1.0, %v702
    %v712 = vmul.f32 %v711, %v672
    %v713 = vadd.f32 %v710, %v712
    %v714 = vmul.f32 %v702, %v672
    %v715 = vsub.f32 1.0, %v703
    %v716 = vmul.f32 %v715, %v676
    %v717 = vadd.f32 %v714, %v716
    %v718 = vmul.f32 %v703, %v676
    %v719 = vsub.f32 1.0, %v704
    %v720 = vmul.f32 %v719, %v680
    %v721 = vadd.f32 %v718, %v720
    %v722 = vmul.f32 %v704, %v680
    %v723 = vsub.f32 1.0, %v705
    %v724 = vmul.f32 %v723, %v684
    %v725 = vadd.f32 %v722, %v724
    %v726 = vmul.f32 %v705, %v684
    %v727 = vsub.f32 1.0, %v706
    %v728 = vmul.f32 %v727, %v688
    %v729 = vadd.f32 %v726, %v728
    %v730 = vmul.f32 %v706, %v688
    %v731 = vsub.f32 1.0, %v707
    %v732 = vmul.f32 %v731, %v692
    %v733 = vadd.f32 %v730, %v732
    %v734 = vmul.f32 %v707, %v692
    %v735 = vsub.f32 1.0, %v708
    %v736 = vmul.f32 %v735, %v696
    %v737 = vadd.f32 %v734, %v736
    %v738 = vmul.f32 %v708, %v696
    %v739 = vsub.f32 1.0, %v709
    %v740 = vmul.f32 %v739, %v700
    %v741 = vadd.f32 %v738, %v740
    %743 = vrot.lane.b32.xlu0 %v713, 64
    %v744 = vpop.permute.xlu0 %743
    %747 = vrot.lane.b32.xlu0 %v721, 64
    %v748 = vpop.permute.xlu0 %747
    %751 = vrot.lane.b32.xlu0 %v729, 64
    %v752 = vpop.permute.xlu0 %751
    %755 = vrot.lane.b32.xlu0 %v737, 64
    %v756 = vpop.permute.xlu0 %755
    %v758 = vsel %vm242, %v537, %v744
    %v759 = vsel %vm242, %v717, %v748
    %v760 = vsel %vm242, %v725, %v752
    %v761 = vsel %vm242, %v733, %v756
    %v762 = vld [vmem:[%s2] sm:$0xff]
    %v763 = vld [vmem:[%s2 + $0x8] sm:$0xff]
    %v764 = vld [vmem:[%s2 + $0x10] sm:$0xff]
    %v765 = vld [vmem:[%s2 + $0x18] sm:$0xff]
    %v766 = vld [vmem:[%s2 + $0x20] sm:$0xff]
    %v767 = vld [vmem:[%s2 + $0x28] sm:$0xff]
    %v768 = vld [vmem:[%s2 + $0x30] sm:$0xff]
    %v769 = vld [vmem:[%s2 + $0x38] sm:$0xff]
    %v770 = vld [vmem:[%s2 + $0x40] sm:$0xff]
    %v771 = vld [vmem:[%s2 + $0x48] sm:$0xff]
    %v772 = vld [vmem:[%s2 + $0x50] sm:$0xff]
    %v773 = vld [vmem:[%s2 + $0x58] sm:$0xff]
    %v774 = vld [vmem:[%s2 + $0x60] sm:$0xff]
    %v775 = vld [vmem:[%s2 + $0x68] sm:$0xff]
    %v776 = vld [vmem:[%s2 + $0x70] sm:$0xff]
    %v777 = vld [vmem:[%s2 + $0x78] sm:$0xff]
    %v778 = vld [vmem:[%s2 + $0x80] sm:$0xff]
    %v779 = vld [vmem:[%s2 + $0x88] sm:$0xff]
    %v780 = vld [vmem:[%s2 + $0x90] sm:$0xff]
    %v781 = vld [vmem:[%s2 + $0x98] sm:$0xff]
    %v782 = vld [vmem:[%s2 + $0xa0] sm:$0xff]
    %v783 = vld [vmem:[%s2 + $0xa8] sm:$0xff]
    %v784 = vld [vmem:[%s2 + $0xb0] sm:$0xff]
    %v785 = vld [vmem:[%s2 + $0xb8] sm:$0xff]
    %v786 = vld [vmem:[%s2 + $0xc0] sm:$0xff]
    %v787 = vld [vmem:[%s2 + $0xc8] sm:$0xff]
    %v788 = vld [vmem:[%s2 + $0xd0] sm:$0xff]
    %v789 = vld [vmem:[%s2 + $0xd8] sm:$0xff]
    %v790 = vld [vmem:[%s2 + $0xe0] sm:$0xff]
    %v791 = vld [vmem:[%s2 + $0xe8] sm:$0xff]
    %v792 = vld [vmem:[%s2 + $0xf0] sm:$0xff]
    %v793 = vld [vmem:[%s2 + $0xf8] sm:$0xff]
    %v794 = vld [vmem:[%s2 + $0x100] sm:$0xff]
    %v795 = vld [vmem:[%s2 + $0x108] sm:$0xff]
    %v796 = vld [vmem:[%s2 + $0x110] sm:$0xff]
    %v797 = vld [vmem:[%s2 + $0x118] sm:$0xff]
    %v798 = vld [vmem:[%s2 + $0x120] sm:$0xff]
    %v799 = vld [vmem:[%s2 + $0x128] sm:$0xff]
    %v800 = vld [vmem:[%s2 + $0x130] sm:$0xff]
    %v801 = vld [vmem:[%s2 + $0x138] sm:$0xff]
    %v802 = vld [vmem:[%s2 + $0x140] sm:$0xff]
    %v803 = vld [vmem:[%s2 + $0x148] sm:$0xff]
    %v804 = vld [vmem:[%s2 + $0x150] sm:$0xff]
    %v805 = vld [vmem:[%s2 + $0x158] sm:$0xff]
    %v806 = vld [vmem:[%s2 + $0x160] sm:$0xff]
    %v807 = vld [vmem:[%s2 + $0x168] sm:$0xff]
    %v808 = vld [vmem:[%s2 + $0x170] sm:$0xff]
    %v809 = vld [vmem:[%s2 + $0x178] sm:$0xff]
    %v810 = vld [vmem:[%s2 + $0x180] sm:$0xff]
    %v811 = vld [vmem:[%s2 + $0x188] sm:$0xff]
    %v812 = vld [vmem:[%s2 + $0x190] sm:$0xff]
    %v813 = vld [vmem:[%s2 + $0x198] sm:$0xff]
    %v814 = vld [vmem:[%s2 + $0x1a0] sm:$0xff]
    %v815 = vld [vmem:[%s2 + $0x1a8] sm:$0xff]
    %v816 = vld [vmem:[%s2 + $0x1b0] sm:$0xff]
    %v817 = vld [vmem:[%s2 + $0x1b8] sm:$0xff]
    %v818 = vld [vmem:[%s2 + $0x1c0] sm:$0xff]
    %v819 = vld [vmem:[%s2 + $0x1c8] sm:$0xff]
    %v820 = vld [vmem:[%s2 + $0x1d0] sm:$0xff]
    %v821 = vld [vmem:[%s2 + $0x1d8] sm:$0xff]
    %v822 = vld [vmem:[%s2 + $0x1e0] sm:$0xff]
    %v823 = vld [vmem:[%s2 + $0x1e8] sm:$0xff]
    %v824 = vld [vmem:[%s2 + $0x1f0] sm:$0xff]
    %v825 = vld [vmem:[%s2 + $0x1f8] sm:$0xff]
    %v826 = vld [vmem:[%s2 + $0x200] sm:$0xff]
    %v827 = vld [vmem:[%s2 + $0x208] sm:$0xff]
    %v828 = vld [vmem:[%s2 + $0x210] sm:$0xff]
    %v829 = vld [vmem:[%s2 + $0x218] sm:$0xff]
    %v830 = vld [vmem:[%s2 + $0x220] sm:$0xff]
    %v831 = vld [vmem:[%s2 + $0x228] sm:$0xff]
    %v832 = vld [vmem:[%s2 + $0x230] sm:$0xff]
    %v833 = vld [vmem:[%s2 + $0x238] sm:$0xff]
    %v835 = vsel %vm242, %v741, 0
    %837 = vmatprep.subr.mxu0 0.0
    %838 = vmatpush1.msra.mxu0 %v777
    %839 = vmatprep.subr.mxu0 0.0
    %840 = vmatpush1.msra.mxu0 %v776
    %841 = vmatprep.subr.mxu0 0.0
    %842 = vmatpush1.msra.mxu0 %v775
    %843 = vmatprep.subr.mxu0 0.0
    %844 = vmatpush1.msra.mxu0 %v774
    %845 = vmatprep.subr.mxu0 0.0
    %846 = vmatpush1.msra.mxu0 %v773
    %847 = vmatprep.subr.mxu0 0.0
    %848 = vmatpush1.msra.mxu0 %v772
    %849 = vmatprep.subr.mxu0 0.0
    %850 = vmatpush1.msra.mxu0 %v771
    %851 = vmatprep.subr.mxu0 0.0
    %852 = vmatpush1.msra.mxu0 %v770
    %853 = vmatprep.subr.mxu0 0.0
    %854 = vmatpush1.msra.mxu0 %v769
    %855 = vmatprep.subr.mxu0 0.0
    %856 = vmatpush1.msra.mxu0 %v768
    %857 = vmatprep.subr.mxu0 0.0
    %858 = vmatpush1.msra.mxu0 %v767
    %859 = vmatprep.subr.mxu0 0.0
    %860 = vmatpush1.msra.mxu0 %v766
    %861 = vmatprep.subr.mxu0 0.0
    %862 = vmatpush1.msra.mxu0 %v765
    %863 = vmatprep.subr.mxu0 0.0
    %864 = vmatpush1.msra.mxu0 %v764
    %865 = vmatprep.subr.mxu0 0.0
    %866 = vmatpush1.msra.mxu0 %v763
    %867 = vmatprep.subr.mxu0 0.0
    %868 = vmatpush1.msra.mxu0 %v762
    %869 = vmatprep.subr.mxu0 0.0
    %870 = vmatpush2.msra.mxu0 %v793
    %871 = vmatprep.subr.mxu0 0.0
    %872 = vmatpush2.msra.mxu0 %v792
    %873 = vmatprep.subr.mxu0 0.0
    %874 = vmatpush2.msra.mxu0 %v791
    %875 = vmatprep.subr.mxu0 0.0
    %876 = vmatpush2.msra.mxu0 %v790
    %877 = vmatprep.subr.mxu0 0.0
    %878 = vmatpush2.msra.mxu0 %v789
    %879 = vmatprep.subr.mxu0 0.0
    %880 = vmatpush2.msra.mxu0 %v788
    %881 = vmatprep.subr.mxu0 0.0
    %882 = vmatpush2.msra.mxu0 %v787
    %883 = vmatprep.subr.mxu0 0.0
    %884 = vmatpush2.msra.mxu0 %v786
    %885 = vmatprep.subr.mxu0 0.0
    %886 = vmatpush2.msra.mxu0 %v785
    %887 = vmatprep.subr.mxu0 0.0
    %888 = vmatpush2.msra.mxu0 %v784
    %889 = vmatprep.subr.mxu0 0.0
    %890 = vmatpush2.msra.mxu0 %v783
    %891 = vmatprep.subr.mxu0 0.0
    %892 = vmatpush2.msra.mxu0 %v782
    %893 = vmatprep.subr.mxu0 0.0
    %894 = vmatpush2.msra.mxu0 %v781
    %895 = vmatprep.subr.mxu0 0.0
    %896 = vmatpush2.msra.mxu0 %v780
    %897 = vmatprep.subr.mxu0 0.0
    %898 = vmatpush2.msra.mxu0 %v779
    %899 = vmatprep.subr.mxu0 0.0
    %900 = vmatpush2.msra.mxu0 %v778
    %901 = vmatprep.mubr.f32.mxu0 %v759
    %902 = vmatmul.mubr.f32.gmra.mxu0 %v758
    %v903 = vpop.f32.mrf.mxu0
    %v904 = vadd.f32 0.0, %v903
    %v905 = vpop.f32.mrf.mxu0
    %906 = vdwg.mxu0
    %907 = vmatprep.subr.mxu0 0.0
    %908 = vmatpush1.msra.mxu0 %v809
    %909 = vmatprep.subr.mxu0 0.0
    %910 = vmatpush1.msra.mxu0 %v808
    %911 = vmatprep.subr.mxu0 0.0
    %912 = vmatpush1.msra.mxu0 %v807
    %913 = vmatprep.subr.mxu0 0.0
    %914 = vmatpush1.msra.mxu0 %v806
    %915 = vmatprep.subr.mxu0 0.0
    %916 = vmatpush1.msra.mxu0 %v805
    %917 = vmatprep.subr.mxu0 0.0
    %918 = vmatpush1.msra.mxu0 %v804
    %919 = vmatprep.subr.mxu0 0.0
    %920 = vmatpush1.msra.mxu0 %v803
    %921 = vmatprep.subr.mxu0 0.0
    %922 = vmatpush1.msra.mxu0 %v802
    %923 = vmatprep.subr.mxu0 0.0
    %924 = vmatpush1.msra.mxu0 %v801
    %925 = vmatprep.subr.mxu0 0.0
    %926 = vmatpush1.msra.mxu0 %v800
    %927 = vmatprep.subr.mxu0 0.0
    %928 = vmatpush1.msra.mxu0 %v799
    %929 = vmatprep.subr.mxu0 0.0
    %930 = vmatpush1.msra.mxu0 %v798
    %931 = vmatprep.subr.mxu0 0.0
    %932 = vmatpush1.msra.mxu0 %v797
    %933 = vmatprep.subr.mxu0 0.0
    %934 = vmatpush1.msra.mxu0 %v796
    %935 = vmatprep.subr.mxu0 0.0
    %936 = vmatpush1.msra.mxu0 %v795
    %937 = vmatprep.subr.mxu0 0.0
    %938 = vmatpush1.msra.mxu0 %v794
    %939 = vmatprep.subr.mxu0 0.0
    %940 = vmatpush2.msra.mxu0 %v825
    %941 = vmatprep.subr.mxu0 0.0
    %942 = vmatpush2.msra.mxu0 %v824
    %943 = vmatprep.subr.mxu0 0.0
    %944 = vmatpush2.msra.mxu0 %v823
    %945 = vmatprep.subr.mxu0 0.0
    %946 = vmatpush2.msra.mxu0 %v822
    %947 = vmatprep.subr.mxu0 0.0
    %948 = vmatpush2.msra.mxu0 %v821
    %949 = vmatprep.subr.mxu0 0.0
    %950 = vmatpush2.msra.mxu0 %v820
    %951 = vmatprep.subr.mxu0 0.0
    %952 = vmatpush2.msra.mxu0 %v819
    %953 = vmatprep.subr.mxu0 0.0
    %954 = vmatpush2.msra.mxu0 %v818
    %955 = vmatprep.subr.mxu0 0.0
    %956 = vmatpush2.msra.mxu0 %v817
    %957 = vmatprep.subr.mxu0 0.0
    %958 = vmatpush2.msra.mxu0 %v816
    %959 = vmatprep.subr.mxu0 0.0
    %960 = vmatpush2.msra.mxu0 %v815
    %961 = vmatprep.subr.mxu0 0.0
    %962 = vmatpush2.msra.mxu0 %v814
    %963 = vmatprep.subr.mxu0 0.0
    %964 = vmatpush2.msra.mxu0 %v813
    %965 = vmatprep.subr.mxu0 0.0
    %966 = vmatpush2.msra.mxu0 %v812
    %967 = vmatprep.subr.mxu0 0.0
    %968 = vmatpush2.msra.mxu0 %v811
    %969 = vmatprep.subr.mxu0 0.0
    %970 = vmatpush2.msra.mxu0 %v810
    %971 = vmatprep.mubr.f32.mxu0 %v761
    %972 = vmatmul.mubr.f32.gmra.mxu0 %v760
    %v973 = vpop.f32.mrf.mxu0
    %v974 = vadd.f32 %v904, %v973
    %v975 = vpop.f32.mrf.mxu0
    %976 = vdwg.mxu0
    %977 = vmatprep.subr.mxu0 0.0
    %978 = vmatpush1.msra.mxu0 0.0
    %979 = vmatprep.subr.mxu0 0.0
    %980 = vmatpush1.msra.mxu0 0.0
    %981 = vmatprep.subr.mxu0 0.0
    %982 = vmatpush1.msra.mxu0 0.0
    %983 = vmatprep.subr.mxu0 0.0
    %984 = vmatpush1.msra.mxu0 0.0
    %985 = vmatprep.subr.mxu0 0.0
    %986 = vmatpush1.msra.mxu0 0.0
    %987 = vmatprep.subr.mxu0 0.0
    %988 = vmatpush1.msra.mxu0 0.0
    %989 = vmatprep.subr.mxu0 0.0
    %990 = vmatpush1.msra.mxu0 0.0
    %991 = vmatprep.subr.mxu0 0.0
    %992 = vmatpush1.msra.mxu0 0.0
    %993 = vmatprep.subr.mxu0 0.0
    %994 = vmatpush1.msra.mxu0 %v833
    %995 = vmatprep.subr.mxu0 0.0
    %996 = vmatpush1.msra.mxu0 %v832
    %997 = vmatprep.subr.mxu0 0.0
    %998 = vmatpush1.msra.mxu0 %v831
    %999 = vmatprep.subr.mxu0 0.0
    %1000 = vmatpush1.msra.mxu0 %v830
    %1001 = vmatprep.subr.mxu0 0.0
    %1002 = vmatpush1.msra.mxu0 %v829
    %1003 = vmatprep.subr.mxu0 0.0
    %1004 = vmatpush1.msra.mxu0 %v828
    %1005 = vmatprep.subr.mxu0 0.0
    %1006 = vmatpush1.msra.mxu0 %v827
    %1007 = vmatprep.subr.mxu0 0.0
    %1008 = vmatpush1.msra.mxu0 %v826
    %1009 = vmatprep.subr.mxu0 0.0
    %1010 = vmatpush2.msra.mxu0 0.0
    %1011 = vmatprep.subr.mxu0 0.0
    %1012 = vmatpush2.msra.mxu0 0.0
    %1013 = vmatprep.subr.mxu0 0.0
    %1014 = vmatpush2.msra.mxu0 0.0
    %1015 = vmatprep.subr.mxu0 0.0
    %1016 = vmatpush2.msra.mxu0 0.0
    %1017 = vmatprep.subr.mxu0 0.0
    %1018 = vmatpush2.msra.mxu0 0.0
    %1019 = vmatprep.subr.mxu0 0.0
    %1020 = vmatpush2.msra.mxu0 0.0
    %1021 = vmatprep.subr.mxu0 0.0
    %1022 = vmatpush2.msra.mxu0 0.0
    %1023 = vmatprep.subr.mxu0 0.0
    %1024 = vmatpush2.msra.mxu0 0.0
    %1025 = vmatprep.subr.mxu0 0.0
    %1026 = vmatpush2.msra.mxu0 0.0
    %1027 = vmatprep.subr.mxu0 0.0
    %1028 = vmatpush2.msra.mxu0 0.0
    %1029 = vmatprep.subr.mxu0 0.0
    %1030 = vmatpush2.msra.mxu0 0.0
    %1031 = vmatprep.subr.mxu0 0.0
    %1032 = vmatpush2.msra.mxu0 0.0
    %1033 = vmatprep.subr.mxu0 0.0
    %1034 = vmatpush2.msra.mxu0 0.0
    %1035 = vmatprep.subr.mxu0 0.0
    %1036 = vmatpush2.msra.mxu0 0.0
    %1037 = vmatprep.subr.mxu0 0.0
    %1038 = vmatpush2.msra.mxu0 0.0
    %1039 = vmatprep.subr.mxu0 0.0
    %1040 = vmatpush2.msra.mxu0 0.0
    %1041 = vmatprep.mubr.f32.mxu0 0.0
    %1042 = vmatmul.mubr.f32.gmra.mxu0 %v835
    %v1043 = vpop.f32.mrf.mxu0
    %v1044 = vadd.f32 %v974, %v1043
    %v1045 = vpop.f32.mrf.mxu0
    %1046 = vdwg.mxu0
    %1047 = vst [vmem:[#allocation2] sm:$0xff] %v1044
    // Predicated region
    $region14: #{tpu_custom_call.1} parent=1 // pred_check
      _
    $region15: #{tpu_custom_call.1} parent=1 // pred_check_branch
      %1049 = sbr.rel (0) target = $region17
    $region16: #{tpu_custom_call.1} parent=1 // pred_region
      %s1051 = ssub.s32 128, 128
      %1052 = vsyncadd [#allocation3], %s1051
      %s1054 = sshll.u32 [#allocation2], 4
      %s1055 = int_to_ptr.vmem [resolvable:$true] %s1054
      %1057 = dma.vmem_to_hbm [thread:$0]  %s1055, 128, %s3, [#allocation3]
    $region17: #{tpu_custom_call.1} parent=1 // pred_fallthru
      _
    // Predicated region
    $region18: #{tpu_custom_call.1} parent=1 // pred_check
      _
    $region19: #{tpu_custom_call.1} parent=1 // pred_check_branch
      %1059 = sbr.rel (0) target = $region21
    $region20: #{tpu_custom_call.1} parent=1 // pred_region
      %1060 = dma.done [#allocation3], 128
    $region21: #{tpu_custom_call.1} parent=1 // pred_fallthru
      _
    %1061 = vsyncpa [#allocation3], 1

</llo_original>
